<compile_context>
chip_gen: v6e
topology: v6e:2x2x1
jax: 0.10.0
libtpu: 0.0.40
codegen_flags: <defaults>
</compile_context>

<pallas_src>
import numpy as np
import jax
import jax.numpy as jnp
from jax.experimental import pallas as pl
from jax.experimental.pallas import tpu as pltpu

# -----------------------------------------------------------------------------
# Decoder configuration (consistent with HTimeVAEDecoder.__init__)
# -----------------------------------------------------------------------------
SEQ_LEN = 8
FEAT_DIM = 4
HIDDEN_LAYER_SIZES = [8, 16]
LATENT_DIM = 8
ENCODER_LAST_DENSE_DIM = 32
TREND_POLY = 2
CUSTOM_SEAS = [(2, 4), (4, 2)]            # (num_seasons, len_per_season)
LATENT_INDEXES = [0, 1, 2, 3]             # level, trend, seasonal, residual
BATCH = 200                               # padded to a multiple of BATCH_TILE

N_DECONV = len(HIDDEN_LAYER_SIZES)
L_IN = ENCODER_LAST_DENSE_DIM // HIDDEN_LAYER_SIZES[-1]
L_FINAL = L_IN * (2 ** N_DECONV)          # each deconv doubles L
OUT_DIM = SEQ_LEN * FEAT_DIM              # 32
OUT_PAD = 128                             # lane-dense output width
BATCH_TILE = 128                          # MXU M dim per grid step (>=128)


# -----------------------------------------------------------------------------
# Deterministic "torch-style" parameters
# -----------------------------------------------------------------------------
def make_torch_style_params(key):
    scale = 0.1
    n_keys = 8 + 2 * len(CUSTOM_SEAS) + 2 + 2 * N_DECONV + 2
    keys = iter(jax.random.split(key, n_keys))

    def nrm(shape):
        return np.asarray(jax.random.normal(next(keys), shape, jnp.float32)) * scale

    p = {}
    # LevelModel
    p["lvl_w1"], p["lvl_b1"] = nrm((FEAT_DIM, LATENT_DIM)), nrm((FEAT_DIM,))
    p["lvl_w2"], p["lvl_b2"] = nrm((FEAT_DIM, FEAT_DIM)), nrm((FEAT_DIM,))
    # TrendLayer
    fp = FEAT_DIM * TREND_POLY
    p["trd_w1"], p["trd_b1"] = nrm((fp, LATENT_DIM)), nrm((fp,))
    p["trd_w2"], p["trd_b2"] = nrm((fp, fp)), nrm((fp,))
    # SeasonalLayer
    p["seas"] = [(nrm((FEAT_DIM * ns, LATENT_DIM)), nrm((FEAT_DIM * ns,)))
                 for (ns, _) in CUSTOM_SEAS]
    # ResidualConnection
    p["res_dw"], p["res_db"] = nrm((ENCODER_LAST_DENSE_DIM, LATENT_DIM)), nrm((ENCODER_LAST_DENSE_DIM,))
    chans = [HIDDEN_LAYER_SIZES[-1]] + list(reversed(HIDDEN_LAYER_SIZES[:-1])) + [FEAT_DIM]
    p["res_deconv"] = [(nrm((chans[i], chans[i + 1], 3)), nrm((chans[i + 1],)))
                       for i in range(N_DECONV)]
    p["res_fw"], p["res_fb"] = nrm((OUT_DIM, FEAT_DIM * L_FINAL)), nrm((OUT_DIM,))
    return p


# -----------------------------------------------------------------------------
# Host-side glue: fold each component into bias-augmented bf16 matmul chains
# -----------------------------------------------------------------------------
def _season_indexes(num_seasons, len_per_season, seq_len):
    idx = np.repeat(np.arange(num_seasons), len_per_season)
    return np.tile(idx, seq_len // len_per_season + 1)[:seq_len]


def _aug(w, b):
    """[x, 1] @ aug(w, b) == [x @ w + b, 1]; ReLU preserves the carry 1."""
    k, n = w.shape
    out = np.zeros((k + 1, n + 1), np.float32)
    out[:k, :n] = w
    out[k, :n] = b
    out[k, n] = 1.0
    return out


def _aug_last(w, b, out_pad=OUT_PAD):
    """Last matmul of a chain: fold bias, drop the carry column, zero-pad to 128 lanes."""
    k, n = w.shape
    out = np.zeros((k + 1, out_pad), np.float32)
    out[:k, :n] = w
    out[k, :n] = b
    return out


def build_fused_params(p):
    """All final-stage matrices use t-major / feature-minor output columns
    (column t*FEAT_DIM + f), matching torch's .view(-1, seq_len, feat_dim)."""
    F, D, P, S = FEAT_DIM, LATENT_DIM, TREND_POLY, SEQ_LEN

    # --- LevelModel: relu(z@W1^T+b1) -> (@W2^T+b2), broadcast over time -------
    tile = np.zeros((F, OUT_DIM), np.float32)
    for t in range(S):
        for f in range(F):
            tile[f, t * F + f] = 1.0
    lvl_w1 = _aug(p["lvl_w1"].T, p["lvl_b1"])                        # (D+1, F+1)
    lvl_w2 = _aug_last(p["lvl_w2"].T @ tile, p["lvl_b2"] @ tile)     # (F+1, 128)

    # --- TrendLayer: relu(z@W1^T+b1) -> (@W2^T+b2) x poly_space, permuted -----
    fp = F * P
    lin = np.arange(S, dtype=np.float32) / S
    poly = np.stack([lin ** (q + 1) for q in range(P)], axis=0)      # (P, S)
    m_tr = np.zeros((fp, OUT_DIM), np.float32)
    for f in range(F):
        for q in range(P):
            for t in range(S):
                m_tr[f * P + q, t * F + f] = poly[q, t]
    trd_w1 = _aug(p["trd_w1"].T, p["trd_b1"])                        # (D+1, FP+1)
    trd_w2 = _aug_last(p["trd_w2"].T @ m_tr, p["trd_b2"] @ m_tr)     # (FP+1, 128)

    # --- SeasonalLayer: sum_i gather(z@Wi^T+bi) folded to ONE dense matmul ----
    sw = np.zeros((D, OUT_DIM), np.float32)
    sb = np.zeros((OUT_DIM,), np.float32)
    for (ns, lps), (wi, bi) in zip(CUSTOM_SEAS, p["seas"]):
        idx = _season_indexes(ns, lps, S)
        g = np.zeros((F * ns, OUT_DIM), np.float32)
        for f in range(F):
            for t in range(S):
                g[f * ns + idx[t], t * F + f] = 1.0
        sw += wi.T @ g
        sb += bi @ g
    seas_w = _aug_last(sw, sb)                                       # (D+1, 128)

    # --- ResidualConnection ----------------------------------------------------
    res_d = _aug(p["res_dw"].T, p["res_db"])                         # (D+1, E+1)
    bands = []
    L = L_IN
    for (w, b) in p["res_deconv"]:
        cin, cout, K = w.shape
        lout = 2 * L
        # ConvTranspose1d (k=3,s=2,p=1,op=1): y[:,co,t] += x[:,ci,s]*w[ci,co,k], t = 2s-1+k.
        # Activation layout is t-major / channel-minor.
        m = np.zeros((L * cin, lout * cout), np.float32)
        for s in range(L):
            for k in range(K):
                t = 2 * s - 1 + k
                if 0 <= t < lout:
                    m[s * cin:(s + 1) * cin, t * cout:(t + 1) * cout] += w[:, :, k]
        bands.append(_aug(m, np.tile(b, lout)))                      # (L*cin+1, 2L*cout+1)
        L = lout
    # torch flatten(1) of the NCL tensor is channel-major; kernel layout is
    # t-major -> permute the input columns of final_dense.weight.
    perm = np.array([c * L_FINAL + t for t in range(L_FINAL) for c in range(FEAT_DIM)])
    res_f = _aug_last(p["res_fw"][:, perm].T, p["res_fb"])           # (F*L_FINAL+1, 128)

    mats = [lvl_w1, lvl_w2, trd_w1, trd_w2, seas_w, res_d] + bands + [res_f]
    return tuple(jnp.asarray(m, jnp.bfloat16) for m in mats)         # bf16 MXU inputs


# -----------------------------------------------------------------------------
# Pallas kernel: all four components fused, one batch tile per grid step
# -----------------------------------------------------------------------------
def make_decoder_kernel(n_deconv):
    def kernel(*refs):
        z_lvl, z_trd, z_sea, z_res = refs[0:4]
        lvl_w1, lvl_w2, trd_w1, trd_w2, seas_w, res_d = refs[4:10]
        bands = refs[10:10 + n_deconv]
        res_f = refs[10 + n_deconv]
        out_ref = refs[11 + n_deconv]

        def mm(x, w_ref):                       # bf16 x bf16 -> f32 accumulation (MXU)
            return jnp.dot(x, w_ref[...], preferred_element_type=jnp.float32)

        def relu16(x):                          # ReLU in f32 (VPU), cast for the next MXU op
            return jnp.maximum(x, 0.0).astype(jnp.bfloat16)

        lvl = mm(relu16(mm(z_lvl[...], lvl_w1)), lvl_w2)     # LevelModel
        trd = mm(relu16(mm(z_trd[...], trd_w1)), trd_w2)     # TrendLayer
        sea = mm(z_sea[...], seas_w)                         # SeasonalLayer (single matmul)
        r = relu16(mm(z_res[...], res_d))                    # ResidualConnection
        for b_ref in bands:                                  # deconvs as band matmuls
            r = relu16(mm(r, b_ref))
        res = mm(r, res_f)

        out_ref[...] = lvl + trd + sea + res                 # f32, lane-dense (TB, 128) store
    return kernel


def htimevae_decoder_forward(z, fused_params, batch_tile=BATCH_TILE):
    """z: (>=4, B, LATENT_DIM) float32 hierarchical latents -> (B, SEQ_LEN, FEAT_DIM)."""
    n_lat, b, d = z.shape
    assert d == LATENT_DIM and n_lat > max(LATENT_INDEXES)
    n_tiles = pl.cdiv(b, batch_tile)
    b_pad = n_tiles * batch_tile

    # Pad batch to a tile multiple and append the carry-one column (bias folding).
    zp = jnp.pad(z, ((0, 0), (0, b_pad - b), (0, 0)))
    z_aug = jnp.concatenate([zp, jnp.ones((n_lat, b_pad, 1), zp.dtype)], axis=-1)
    z_aug = z_aug.astype(jnp.bfloat16)
    z_in = [z_aug[LATENT_INDEXES[i]] for i in range(4)]               # (b_pad, D+1) each

    act_spec = pl.BlockSpec((batch_tile, LATENT_DIM + 1), lambda i: (i, 0))
    weight_specs = [pl.BlockSpec(w.shape, lambda i: (0, 0))           # resident across steps
                    for w in fused_params]

    out = pl.pallas_call(
        make_decoder_kernel(N_DECONV),
        out_shape=jax.ShapeDtypeStruct((b_pad, OUT_PAD), jnp.float32),
        grid=(n_tiles,),
        in_specs=[act_spec] * 4 + weight_specs,
        out_specs=pl.BlockSpec((batch_tile, OUT_PAD), lambda i: (i, 0)),
        compiler_params=pltpu.CompilerParams(
            dimension_semantics=("parallel",),        # batch axis -> both TCs on v7x
            vmem_limit_bytes=64 * 1024 * 1024,        # tiny footprint; explicit for v7x's 64 MiB VMEM
        ),
    )(*z_in, *fused_params)

    return out[:b, :OUT_DIM].reshape(b, SEQ_LEN, FEAT_DIM)


# -----------------------------------------------------------------------------
# Pure NumPy reference replicating the PyTorch HTimeVAEDecoder forward exactly
# -----------------------------------------------------------------------------
def ref_forward(z, p):
    z = np.asarray(z, np.float32)
    b = z.shape[1]
    F, S, P = FEAT_DIM, SEQ_LEN, TREND_POLY

    # LevelModel
    z0 = z[LATENT_INDEXES[0]]
    h = np.maximum(z0 @ p["lvl_w1"].T + p["lvl_b1"], 0.0)
    lp = h @ p["lvl_w2"].T + p["lvl_b2"]
    out = np.broadcast_to(lp[:, None, :], (b, S, F)).astype(np.float32).copy()

    # TrendLayer
    z1 = z[LATENT_INDEXES[1]]
    tp = np.maximum(z1 @ p["trd_w1"].T + p["trd_b1"], 0.0)
    tp = (tp @ p["trd_w2"].T + p["trd_b2"]).reshape(b, F, P)
    lin = np.arange(S, dtype=np.float32) / S
    poly = np.stack([lin ** (q + 1) for q in range(P)], axis=0)
    out += np.matmul(tp, poly).transpose(0, 2, 1)

    # SeasonalLayer
    z2 = z[LATENT_INDEXES[2]]
    seas_sum = np.zeros((b, F, S), np.float32)
    for (ns, lps), (wi, bi) in zip(CUSTOM_SEAS, p["seas"]):
        sp = (z2 @ wi.T + bi).reshape(b, F, ns)
        idx = _season_indexes(ns, lps, S)
        seas_sum += sp[:, :, idx]
    out += seas_sum.transpose(0, 2, 1)

    # ResidualConnection
    z3 = z[LATENT_INDEXES[3]]
    x = np.maximum(z3 @ p["res_dw"].T + p["res_db"], 0.0)
    x = x.reshape(b, L_IN, HIDDEN_LAYER_SIZES[-1]).transpose(0, 2, 1)     # (B, C, L)
    for (w, bb) in p["res_deconv"]:
        cin, cout, K = w.shape
        L = x.shape[2]
        lout = 2 * L
        y = np.zeros((b, cout, lout), np.float32)
        for s in range(L):
            for k in range(K):
                t = 2 * s - 1 + k
                if 0 <= t < lout:
                    y[:, :, t] += x[:, :, s] @ w[:, :, k]
        y += bb[None, :, None]
        x = np.maximum(y, 0.0)
    xf = x.reshape(b, -1)                                                  # flatten(1) of NCL
    out += (xf @ p["res_fw"].T + p["res_fb"]).reshape(b, S, F)
    return out


if __name__ == "__main__":
    key = jax.random.PRNGKey(0)
    kz, kp = jax.random.split(key)
    z = jax.random.normal(kz, (4, BATCH, LATENT_DIM), jnp.float32)

    params = make_torch_style_params(kp)
    fused = build_fused_params(params)

    out = htimevae_decoder_forward(z, fused)
    out = jax.block_until_ready(out)

    ref = ref_forward(z, params)
    # bf16 MXU inputs with f32 accumulation vs. the pure-f32 PyTorch reference:
    # ~0.4% per rounding.  For bit-level f32 parity, keep weights f32 and pass
    # precision=jax.lax.Precision.HIGHEST to the dots instead.
    np.testing.assert_allclose(np.asarray(out, np.float32), ref, rtol=2e-2, atol=2e-2)
    print("KERNEL_OK")
</pallas_src>

<mosaic_0001>
module attributes {stable_mosaic.version = 11 : i64} {
  func.func @kernel(%arg0: i32, %arg1: memref<128x9xbf16, #tpu.memory_space<vmem>>, %arg2: memref<128x9xbf16, #tpu.memory_space<vmem>>, %arg3: memref<128x9xbf16, #tpu.memory_space<vmem>>, %arg4: memref<128x9xbf16, #tpu.memory_space<vmem>>, %arg5: memref<9x5xbf16, #tpu.memory_space<vmem>>, %arg6: memref<5x128xbf16, #tpu.memory_space<vmem>>, %arg7: memref<9x9xbf16, #tpu.memory_space<vmem>>, %arg8: memref<9x128xbf16, #tpu.memory_space<vmem>>, %arg9: memref<9x128xbf16, #tpu.memory_space<vmem>>, %arg10: memref<9x33xbf16, #tpu.memory_space<vmem>>, %arg11: memref<33x33xbf16, #tpu.memory_space<vmem>>, %arg12: memref<33x33xbf16, #tpu.memory_space<vmem>>, %arg13: memref<33x128xbf16, #tpu.memory_space<vmem>>, %arg14: memref<128x128xf32, #tpu.memory_space<vmem>>) attributes {dimension_semantics = [#tpu.dimension_semantics<parallel>], iteration_bounds = array<i64: 2>, scalar_prefetch = 0 : i64, scratch_operands = 0 : i64, tpu.core_type = #tpu.core_type<tc>, window_params = [{transform_indices = @transform_0, window_bounds = array<i64: 128, 9>}, {transform_indices = @transform_1, window_bounds = array<i64: 128, 9>}, {transform_indices = @transform_2, window_bounds = array<i64: 128, 9>}, {transform_indices = @transform_3, window_bounds = array<i64: 128, 9>}, {pipeline_mode = #tpu.pipeline_mode<synchronous>, transform_indices = @transform_4, window_bounds = array<i64: 9, 5>}, {pipeline_mode = #tpu.pipeline_mode<synchronous>, transform_indices = @transform_5, window_bounds = array<i64: 5, 128>}, {pipeline_mode = #tpu.pipeline_mode<synchronous>, transform_indices = @transform_6, window_bounds = array<i64: 9, 9>}, {pipeline_mode = #tpu.pipeline_mode<synchronous>, transform_indices = @transform_7, window_bounds = array<i64: 9, 128>}, {pipeline_mode = #tpu.pipeline_mode<synchronous>, transform_indices = @transform_8, window_bounds = array<i64: 9, 128>}, {pipeline_mode = #tpu.pipeline_mode<synchronous>, transform_indices = @transform_9, window_bounds = array<i64: 9, 33>}, {pipeline_mode = #tpu.pipeline_mode<synchronous>, transform_indices = @transform_10, window_bounds = array<i64: 33, 33>}, {pipeline_mode = #tpu.pipeline_mode<synchronous>, transform_indices = @transform_11, window_bounds = array<i64: 33, 33>}, {pipeline_mode = #tpu.pipeline_mode<synchronous>, transform_indices = @transform_12, window_bounds = array<i64: 33, 128>}, {transform_indices = @transform_13, window_bounds = array<i64: 128, 128>}]} {
    %c0 = arith.constant 0 : index
    %c0_0 = arith.constant 0 : index
    %0 = vector.load %arg1[%c0, %c0_0] : memref<128x9xbf16, #tpu.memory_space<vmem>>, vector<128x9xbf16>
    %c0_1 = arith.constant 0 : index
    %c0_2 = arith.constant 0 : index
    %1 = vector.load %arg5[%c0_1, %c0_2] : memref<9x5xbf16, #tpu.memory_space<vmem>>, vector<9x5xbf16>
    %cst = arith.constant dense<0.000000e+00> : vector<128x5xf32>
    %2 = tpu.matmul %0, %1, %cst {dimension_numbers = #tpu.dot_dimension_numbers<[1], [0], [0], [1], [0, 0, 1, 1], [], []>} : vector<128x9xbf16>, vector<9x5xbf16>, vector<128x5xf32> -> vector<128x5xf32>
    %cst_3 = arith.constant 0.000000e+00 : f32
    %3 = vector.broadcast %cst_3 : f32 to vector<128x5xf32>
    %4 = arith.maximumf %2, %3 : vector<128x5xf32>
    %5 = arith.truncf %4 : vector<128x5xf32> to vector<128x5xbf16>
    %c0_4 = arith.constant 0 : index
    %c0_5 = arith.constant 0 : index
    %6 = vector.load %arg6[%c0_4, %c0_5] : memref<5x128xbf16, #tpu.memory_space<vmem>>, vector<5x128xbf16>
    %cst_6 = arith.constant dense<0.000000e+00> : vector<128x128xf32>
    %7 = tpu.matmul %5, %6, %cst_6 {dimension_numbers = #tpu.dot_dimension_numbers<[1], [0], [0], [1], [0, 0, 1, 1], [], []>} : vector<128x5xbf16>, vector<5x128xbf16>, vector<128x128xf32> -> vector<128x128xf32>
    %c0_7 = arith.constant 0 : index
    %c0_8 = arith.constant 0 : index
    %8 = vector.load %arg2[%c0_7, %c0_8] : memref<128x9xbf16, #tpu.memory_space<vmem>>, vector<128x9xbf16>
    %c0_9 = arith.constant 0 : index
    %c0_10 = arith.constant 0 : index
    %9 = vector.load %arg7[%c0_9, %c0_10] : memref<9x9xbf16, #tpu.memory_space<vmem>>, vector<9x9xbf16>
    %cst_11 = arith.constant dense<0.000000e+00> : vector<128x9xf32>
    %10 = tpu.matmul %8, %9, %cst_11 {dimension_numbers = #tpu.dot_dimension_numbers<[1], [0], [0], [1], [0, 0, 1, 1], [], []>} : vector<128x9xbf16>, vector<9x9xbf16>, vector<128x9xf32> -> vector<128x9xf32>
    %cst_12 = arith.constant 0.000000e+00 : f32
    %11 = vector.broadcast %cst_12 : f32 to vector<128x9xf32>
    %12 = arith.maximumf %10, %11 : vector<128x9xf32>
    %13 = arith.truncf %12 : vector<128x9xf32> to vector<128x9xbf16>
    %c0_13 = arith.constant 0 : index
    %c0_14 = arith.constant 0 : index
    %14 = vector.load %arg8[%c0_13, %c0_14] : memref<9x128xbf16, #tpu.memory_space<vmem>>, vector<9x128xbf16>
    %cst_15 = arith.constant dense<0.000000e+00> : vector<128x128xf32>
    %15 = tpu.matmul %13, %14, %cst_15 {dimension_numbers = #tpu.dot_dimension_numbers<[1], [0], [0], [1], [0, 0, 1, 1], [], []>} : vector<128x9xbf16>, vector<9x128xbf16>, vector<128x128xf32> -> vector<128x128xf32>
    %c0_16 = arith.constant 0 : index
    %c0_17 = arith.constant 0 : index
    %16 = vector.load %arg3[%c0_16, %c0_17] : memref<128x9xbf16, #tpu.memory_space<vmem>>, vector<128x9xbf16>
    %c0_18 = arith.constant 0 : index
    %c0_19 = arith.constant 0 : index
    %17 = vector.load %arg9[%c0_18, %c0_19] : memref<9x128xbf16, #tpu.memory_space<vmem>>, vector<9x128xbf16>
    %cst_20 = arith.constant dense<0.000000e+00> : vector<128x128xf32>
    %18 = tpu.matmul %16, %17, %cst_20 {dimension_numbers = #tpu.dot_dimension_numbers<[1], [0], [0], [1], [0, 0, 1, 1], [], []>} : vector<128x9xbf16>, vector<9x128xbf16>, vector<128x128xf32> -> vector<128x128xf32>
    %c0_21 = arith.constant 0 : index
    %c0_22 = arith.constant 0 : index
    %19 = vector.load %arg4[%c0_21, %c0_22] : memref<128x9xbf16, #tpu.memory_space<vmem>>, vector<128x9xbf16>
    %c0_23 = arith.constant 0 : index
    %c0_24 = arith.constant 0 : index
    %20 = vector.load %arg10[%c0_23, %c0_24] : memref<9x33xbf16, #tpu.memory_space<vmem>>, vector<9x33xbf16>
    %cst_25 = arith.constant dense<0.000000e+00> : vector<128x33xf32>
    %21 = tpu.matmul %19, %20, %cst_25 {dimension_numbers = #tpu.dot_dimension_numbers<[1], [0], [0], [1], [0, 0, 1, 1], [], []>} : vector<128x9xbf16>, vector<9x33xbf16>, vector<128x33xf32> -> vector<128x33xf32>
    %cst_26 = arith.constant 0.000000e+00 : f32
    %22 = vector.broadcast %cst_26 : f32 to vector<128x33xf32>
    %23 = arith.maximumf %21, %22 : vector<128x33xf32>
    %24 = arith.truncf %23 : vector<128x33xf32> to vector<128x33xbf16>
    %c0_27 = arith.constant 0 : index
    %c0_28 = arith.constant 0 : index
    %25 = vector.load %arg11[%c0_27, %c0_28] : memref<33x33xbf16, #tpu.memory_space<vmem>>, vector<33x33xbf16>
    %cst_29 = arith.constant dense<0.000000e+00> : vector<128x33xf32>
    %26 = tpu.matmul %24, %25, %cst_29 {dimension_numbers = #tpu.dot_dimension_numbers<[1], [0], [0], [1], [0, 0, 1, 1], [], []>} : vector<128x33xbf16>, vector<33x33xbf16>, vector<128x33xf32> -> vector<128x33xf32>
    %cst_30 = arith.constant 0.000000e+00 : f32
    %27 = vector.broadcast %cst_30 : f32 to vector<128x33xf32>
    %28 = arith.maximumf %26, %27 : vector<128x33xf32>
    %29 = arith.truncf %28 : vector<128x33xf32> to vector<128x33xbf16>
    %c0_31 = arith.constant 0 : index
    %c0_32 = arith.constant 0 : index
    %30 = vector.load %arg12[%c0_31, %c0_32] : memref<33x33xbf16, #tpu.memory_space<vmem>>, vector<33x33xbf16>
    %cst_33 = arith.constant dense<0.000000e+00> : vector<128x33xf32>
    %31 = tpu.matmul %29, %30, %cst_33 {dimension_numbers = #tpu.dot_dimension_numbers<[1], [0], [0], [1], [0, 0, 1, 1], [], []>} : vector<128x33xbf16>, vector<33x33xbf16>, vector<128x33xf32> -> vector<128x33xf32>
    %cst_34 = arith.constant 0.000000e+00 : f32
    %32 = vector.broadcast %cst_34 : f32 to vector<128x33xf32>
    %33 = arith.maximumf %31, %32 : vector<128x33xf32>
    %34 = arith.truncf %33 : vector<128x33xf32> to vector<128x33xbf16>
    %c0_35 = arith.constant 0 : index
    %c0_36 = arith.constant 0 : index
    %35 = vector.load %arg13[%c0_35, %c0_36] : memref<33x128xbf16, #tpu.memory_space<vmem>>, vector<33x128xbf16>
    %cst_37 = arith.constant dense<0.000000e+00> : vector<128x128xf32>
    %36 = tpu.matmul %34, %35, %cst_37 {dimension_numbers = #tpu.dot_dimension_numbers<[1], [0], [0], [1], [0, 0, 1, 1], [], []>} : vector<128x33xbf16>, vector<33x128xbf16>, vector<128x128xf32> -> vector<128x128xf32>
    %37 = arith.addf %7, %15 : vector<128x128xf32>
    %38 = arith.addf %37, %18 : vector<128x128xf32>
    %39 = arith.addf %38, %36 : vector<128x128xf32>
    %c0_38 = arith.constant 0 : index
    %c0_39 = arith.constant 0 : index
    %40 = vector.load %arg14[%c0_38, %c0_39] : memref<128x128xf32, #tpu.memory_space<vmem>>, vector<128x128xf32>
    tpu.vector_store %arg14[%c0_38, %c0_39], %39 {strides = array<i32>} : memref<128x128xf32, #tpu.memory_space<vmem>>, vector<128x128xf32>,
    return
  }
  func.func @transform_0(%arg0: i32) -> (i32, i32) {
    %c0_i32 = arith.constant 0 : i32
    %c0_i32_0 = arith.constant 0 : i32
    return %arg0, %c0_i32 : i32, i32
  }
  func.func @transform_1(%arg0: i32) -> (i32, i32) {
    %c0_i32 = arith.constant 0 : i32
    %c0_i32_0 = arith.constant 0 : i32
    return %arg0, %c0_i32 : i32, i32
  }
  func.func @transform_2(%arg0: i32) -> (i32, i32) {
    %c0_i32 = arith.constant 0 : i32
    %c0_i32_0 = arith.constant 0 : i32
    return %arg0, %c0_i32 : i32, i32
  }
  func.func @transform_3(%arg0: i32) -> (i32, i32) {
    %c0_i32 = arith.constant 0 : i32
    %c0_i32_0 = arith.constant 0 : i32
    return %arg0, %c0_i32 : i32, i32
  }
  func.func @transform_4(%arg0: i32) -> (i32, i32) {
    %c0_i32 = arith.constant 0 : i32
    %c0_i32_0 = arith.constant 0 : i32
    %c0_i32_1 = arith.constant 0 : i32
    return %c0_i32, %c0_i32_0 : i32, i32
  }
  func.func @transform_5(%arg0: i32) -> (i32, i32) {
    %c0_i32 = arith.constant 0 : i32
    %c0_i32_0 = arith.constant 0 : i32
    %c0_i32_1 = arith.constant 0 : i32
    return %c0_i32, %c0_i32_0 : i32, i32
  }
  func.func @transform_6(%arg0: i32) -> (i32, i32) {
    %c0_i32 = arith.constant 0 : i32
    %c0_i32_0 = arith.constant 0 : i32
    %c0_i32_1 = arith.constant 0 : i32
    return %c0_i32, %c0_i32_0 : i32, i32
  }
  func.func @transform_7(%arg0: i32) -> (i32, i32) {
    %c0_i32 = arith.constant 0 : i32
    %c0_i32_0 = arith.constant 0 : i32
    %c0_i32_1 = arith.constant 0 : i32
    return %c0_i32, %c0_i32_0 : i32, i32
  }
  func.func @transform_8(%arg0: i32) -> (i32, i32) {
    %c0_i32 = arith.constant 0 : i32
    %c0_i32_0 = arith.constant 0 : i32
    %c0_i32_1 = arith.constant 0 : i32
    return %c0_i32, %c0_i32_0 : i32, i32
  }
  func.func @transform_9(%arg0: i32) -> (i32, i32) {
    %c0_i32 = arith.constant 0 : i32
    %c0_i32_0 = arith.constant 0 : i32
    %c0_i32_1 = arith.constant 0 : i32
    return %c0_i32, %c0_i32_0 : i32, i32
  }
  func.func @transform_10(%arg0: i32) -> (i32, i32) {
    %c0_i32 = arith.constant 0 : i32
    %c0_i32_0 = arith.constant 0 : i32
    %c0_i32_1 = arith.constant 0 : i32
    return %c0_i32, %c0_i32_0 : i32, i32
  }
  func.func @transform_11(%arg0: i32) -> (i32, i32) {
    %c0_i32 = arith.constant 0 : i32
    %c0_i32_0 = arith.constant 0 : i32
    %c0_i32_1 = arith.constant 0 : i32
    return %c0_i32, %c0_i32_0 : i32, i32
  }
  func.func @transform_12(%arg0: i32) -> (i32, i32) {
    %c0_i32 = arith.constant 0 : i32
    %c0_i32_0 = arith.constant 0 : i32
    %c0_i32_1 = arith.constant 0 : i32
    return %c0_i32, %c0_i32_0 : i32, i32
  }
  func.func @transform_13(%arg0: i32) -> (i32, i32) {
    %c0_i32 = arith.constant 0 : i32
    %c0_i32_0 = arith.constant 0 : i32
    return %arg0, %c0_i32 : i32, i32
  }
}

</mosaic_0001>

<llo_original>
// kernel: tpu_custom_call.1
$region0: #{tpu_custom_call.1}
  #allocation0 [shape = 'u32[]', space=smem, size = 0x4, offset = 0x4, fixed_abs, tag = 'smem constant byte address 0x4 - core index']
  #allocation1 [shape = 'u32[144,128]{1,0:T(1,128)}', space=vmem, size = 0x12000, scoped, tag = 'internal scratch']
  %s0 = inlined_call_operand.vmem [shape: bf16[256,9], index: 0, kind: input, shape index: {}]
  %s1 = inlined_call_operand.vmem [shape: bf16[256,9], index: 1, kind: input, shape index: {}]
  %s2 = inlined_call_operand.vmem [shape: bf16[256,9], index: 2, kind: input, shape index: {}]
  %s3 = inlined_call_operand.vmem [shape: bf16[256,9], index: 3, kind: input, shape index: {}]
  %s4 = inlined_call_operand.vmem [shape: bf16[9,5], index: 4, kind: input, shape index: {}]
  %s5 = inlined_call_operand.vmem [shape: bf16[5,128], index: 5, kind: input, shape index: {}]
  %s6 = inlined_call_operand.vmem [shape: bf16[9,9], index: 6, kind: input, shape index: {}]
  %s7 = inlined_call_operand.vmem [shape: bf16[9,128], index: 7, kind: input, shape index: {}]
  %s8 = inlined_call_operand.vmem [shape: bf16[9,128], index: 8, kind: input, shape index: {}]
  %s9 = inlined_call_operand.vmem [shape: bf16[9,33], index: 9, kind: input, shape index: {}]
  %s10 = inlined_call_operand.vmem [shape: bf16[33,33], index: 10, kind: input, shape index: {}]
  %s11 = inlined_call_operand.vmem [shape: bf16[33,33], index: 11, kind: input, shape index: {}]
  %s12 = inlined_call_operand.vmem [shape: bf16[33,128], index: 12, kind: input, shape index: {}]
  %s13 = inlined_call_operand.hbm [shape: f32[256,128], index: 13, kind: output, shape index: {}]
  %s14 = sld [smem:[#allocation0]]
  $region85: #{tpu_custom_call.1} parent=0
    _
  %s16 = ssub.s32 1, %s14
  %s17 = scalar_select 0, %s16, %s14
  $region1: #{tpu_custom_call.1} parent=0
    #allocation2 [shape = 'u8[131072]{0}', space=vmem, size = 0x20000, scoped, tag = 'output window, operand 0']
    #allocation3 [shape = 's32[2]{0}', space=sflag, size = 0x8, scoped, tag = 'scoped memory for tpu_custom_call.1']
    %18 = vsyncpa [#allocation3], 0
    %s19 = scalar_lea.sflag [#allocation3], 1
    %20 = vsyncpa %s19, 0
    loop: start=0, step=1, limit=4
    $region2: #{tpu_custom_call.1} parent=1 // loop_pre_header
      _
    $region3: #{tpu_custom_call.1} parent=1 // loop_header
      %s22 = sphi 0, %s26
      %p23 = scmp.ge.s32.totalorder %s22, 4
      %s32 = sphi 0, %s34
      %s35 = sphi 0, %s32
      %s36 = sphi 0, %s35
      %s52 = sphi 0, %s36
      %s58 = sphi 0, %s60
      %s61 = sphi 0, %s58
      %s62 = sphi 0, %s61
      %s78 = sphi 0, %s62
      %s84 = sphi 0, %s86
      %s87 = sphi 0, %s84
      %s88 = sphi 0, %s87
      %s104 = sphi 0, %s88
      %s110 = sphi 0, %s112
      %s113 = sphi 0, %s110
      %s114 = sphi 0, %s113
      %s130 = sphi 0, %s114
      %s134 = sphi 0, %s134
      %s136 = sphi 0, %s134
      %s137 = sphi 0, %s136
      %s151 = sphi 0, %s137
      %s155 = sphi 0, %s155
      %s157 = sphi 0, %s155
      %s158 = sphi 0, %s157
      %s172 = sphi 0, %s158
      %s176 = sphi 0, %s176
      %s178 = sphi 0, %s176
      %s179 = sphi 0, %s178
      %s193 = sphi 0, %s179
      %s197 = sphi 0, %s197
      %s199 = sphi 0, %s197
      %s200 = sphi 0, %s199
      %s214 = sphi 0, %s200
      %s218 = sphi 0, %s218
      %s220 = sphi 0, %s218
      %s221 = sphi 0, %s220
      %s235 = sphi 0, %s221
      %s239 = sphi 0, %s239
      %s241 = sphi 0, %s239
      %s242 = sphi 0, %s241
      %s256 = sphi 0, %s242
      %s260 = sphi 0, %s260
      %s262 = sphi 0, %s260
      %s263 = sphi 0, %s262
      %s277 = sphi 0, %s263
      %s281 = sphi 0, %s281
      %s283 = sphi 0, %s281
      %s284 = sphi 0, %s283
      %s298 = sphi 0, %s284
      %s302 = sphi 0, %s302
      %s304 = sphi 0, %s302
      %s305 = sphi 0, %s304
      %s319 = sphi 0, %s305
      %s325 = sphi 0, %s327
      %s328 = sphi 0, %s325
      %s329 = sphi 0, %s328
      %s345 = sphi 0, %s329
    $region4: #{tpu_custom_call.1} parent=1 // loop_header_branch
      %25 = sbr.rel (%p23) target = $region8
    $region5: #{tpu_custom_call.1} parent=1 // loop_body
      %s27 = ssub.s32 %s22, 1
      %s28 = ssub.s32 %s22, 2
      %s29 = sadd.s32 %s22, 1
      %s30 = ssub.s32 %s22, %s29
      %p31 = scmp.eq.s32.totalorder %s30, 0
      %s33 = sadd.s32 %s32, 1
      %s34 = scalar_select %p31, %s32, %s33
      %p37 = pneg %p31
      %p38 = scmp.eq.s32.totalorder %s22, 1
      %p39 = por %p37, %p38
      %p40 = scmp.ne.s32.totalorder %s32, %s35
      %p41 = scmp.eq.s32.totalorder %s22, 0
      %p42 = por %p40, %p41
      %p43 = scmp.ne.s32.totalorder %s32, %s35
      %p44 = scmp.eq.s32.totalorder %s27, 1
      %p45 = por %p43, %p44
      %p46 = scmp.ne.s32.totalorder %s35, %s36
      %p47 = scmp.eq.s32.totalorder %s27, 0
      %p48 = por %p46, %p47
      %p49 = scmp.ne.s32.totalorder %s35, %s36
      %p50 = scmp.eq.s32.totalorder %s28, 1
      %p51 = por %p49, %p50
      %p53 = scmp.ne.s32.totalorder %s36, %s52
      %p54 = scmp.eq.s32.totalorder %s28, 0
      %p55 = por %p53, %p54
      %s56 = ssub.s32 %s22, %s29
      %p57 = scmp.eq.s32.totalorder %s56, 0
      %s59 = sadd.s32 %s58, 1
      %s60 = scalar_select %p57, %s58, %s59
      %p63 = pneg %p57
      %p64 = scmp.eq.s32.totalorder %s22, 1
      %p65 = por %p63, %p64
      %p66 = scmp.ne.s32.totalorder %s58, %s61
      %p67 = scmp.eq.s32.totalorder %s22, 0
      %p68 = por %p66, %p67
      %p69 = scmp.ne.s32.totalorder %s58, %s61
      %p70 = scmp.eq.s32.totalorder %s27, 1
      %p71 = por %p69, %p70
      %p72 = scmp.ne.s32.totalorder %s61, %s62
      %p73 = scmp.eq.s32.totalorder %s27, 0
      %p74 = por %p72, %p73
      %p75 = scmp.ne.s32.totalorder %s61, %s62
      %p76 = scmp.eq.s32.totalorder %s28, 1
      %p77 = por %p75, %p76
      %p79 = scmp.ne.s32.totalorder %s62, %s78
      %p80 = scmp.eq.s32.totalorder %s28, 0
      %p81 = por %p79, %p80
      %s82 = ssub.s32 %s22, %s29
      %p83 = scmp.eq.s32.totalorder %s82, 0
      %s85 = sadd.s32 %s84, 1
      %s86 = scalar_select %p83, %s84, %s85
      %p89 = pneg %p83
      %p90 = scmp.eq.s32.totalorder %s22, 1
      %p91 = por %p89, %p90
      %p92 = scmp.ne.s32.totalorder %s84, %s87
      %p93 = scmp.eq.s32.totalorder %s22, 0
      %p94 = por %p92, %p93
      %p95 = scmp.ne.s32.totalorder %s84, %s87
      %p96 = scmp.eq.s32.totalorder %s27, 1
      %p97 = por %p95, %p96
      %p98 = scmp.ne.s32.totalorder %s87, %s88
      %p99 = scmp.eq.s32.totalorder %s27, 0
      %p100 = por %p98, %p99
      %p101 = scmp.ne.s32.totalorder %s87, %s88
      %p102 = scmp.eq.s32.totalorder %s28, 1
      %p103 = por %p101, %p102
      %p105 = scmp.ne.s32.totalorder %s88, %s104
      %p106 = scmp.eq.s32.totalorder %s28, 0
      %p107 = por %p105, %p106
      %s108 = ssub.s32 %s22, %s29
      %p109 = scmp.eq.s32.totalorder %s108, 0
      %s111 = sadd.s32 %s110, 1
      %s112 = scalar_select %p109, %s110, %s111
      %p115 = pneg %p109
      %p116 = scmp.eq.s32.totalorder %s22, 1
      %p117 = por %p115, %p116
      %p118 = scmp.ne.s32.totalorder %s110, %s113
      %p119 = scmp.eq.s32.totalorder %s22, 0
      %p120 = por %p118, %p119
      %p121 = scmp.ne.s32.totalorder %s110, %s113
      %p122 = scmp.eq.s32.totalorder %s27, 1
      %p123 = por %p121, %p122
      %p124 = scmp.ne.s32.totalorder %s113, %s114
      %p125 = scmp.eq.s32.totalorder %s27, 0
      %p126 = por %p124, %p125
      %p127 = scmp.ne.s32.totalorder %s113, %s114
      %p128 = scmp.eq.s32.totalorder %s28, 1
      %p129 = por %p127, %p128
      %p131 = scmp.ne.s32.totalorder %s114, %s130
      %p132 = scmp.eq.s32.totalorder %s28, 0
      %p133 = por %p131, %p132
      %s135 = sadd.s32 %s134, 1
      %p138 = scmp.eq.s32.totalorder %s22, 1
      %p139 = scmp.ne.s32.totalorder %s134, %s136
      %p140 = scmp.eq.s32.totalorder %s22, 0
      %p141 = por %p139, %p140
      %p142 = scmp.ne.s32.totalorder %s134, %s136
      %p143 = scmp.eq.s32.totalorder %s27, 1
      %p144 = por %p142, %p143
      %p145 = scmp.ne.s32.totalorder %s136, %s137
      %p146 = scmp.eq.s32.totalorder %s27, 0
      %p147 = por %p145, %p146
      %p148 = scmp.ne.s32.totalorder %s136, %s137
      %p149 = scmp.eq.s32.totalorder %s28, 1
      %p150 = por %p148, %p149
      %p152 = scmp.ne.s32.totalorder %s137, %s151
      %p153 = scmp.eq.s32.totalorder %s28, 0
      %p154 = por %p152, %p153
      %s156 = sadd.s32 %s155, 1
      %p159 = scmp.eq.s32.totalorder %s22, 1
      %p160 = scmp.ne.s32.totalorder %s155, %s157
      %p161 = scmp.eq.s32.totalorder %s22, 0
      %p162 = por %p160, %p161
      %p163 = scmp.ne.s32.totalorder %s155, %s157
      %p164 = scmp.eq.s32.totalorder %s27, 1
      %p165 = por %p163, %p164
      %p166 = scmp.ne.s32.totalorder %s157, %s158
      %p167 = scmp.eq.s32.totalorder %s27, 0
      %p168 = por %p166, %p167
      %p169 = scmp.ne.s32.totalorder %s157, %s158
      %p170 = scmp.eq.s32.totalorder %s28, 1
      %p171 = por %p169, %p170
      %p173 = scmp.ne.s32.totalorder %s158, %s172
      %p174 = scmp.eq.s32.totalorder %s28, 0
      %p175 = por %p173, %p174
      %s177 = sadd.s32 %s176, 1
      %p180 = scmp.eq.s32.totalorder %s22, 1
      %p181 = scmp.ne.s32.totalorder %s176, %s178
      %p182 = scmp.eq.s32.totalorder %s22, 0
      %p183 = por %p181, %p182
      %p184 = scmp.ne.s32.totalorder %s176, %s178
      %p185 = scmp.eq.s32.totalorder %s27, 1
      %p186 = por %p184, %p185
      %p187 = scmp.ne.s32.totalorder %s178, %s179
      %p188 = scmp.eq.s32.totalorder %s27, 0
      %p189 = por %p187, %p188
      %p190 = scmp.ne.s32.totalorder %s178, %s179
      %p191 = scmp.eq.s32.totalorder %s28, 1
      %p192 = por %p190, %p191
      %p194 = scmp.ne.s32.totalorder %s179, %s193
      %p195 = scmp.eq.s32.totalorder %s28, 0
      %p196 = por %p194, %p195
      %s198 = sadd.s32 %s197, 1
      %p201 = scmp.eq.s32.totalorder %s22, 1
      %p202 = scmp.ne.s32.totalorder %s197, %s199
      %p203 = scmp.eq.s32.totalorder %s22, 0
      %p204 = por %p202, %p203
      %p205 = scmp.ne.s32.totalorder %s197, %s199
      %p206 = scmp.eq.s32.totalorder %s27, 1
      %p207 = por %p205, %p206
      %p208 = scmp.ne.s32.totalorder %s199, %s200
      %p209 = scmp.eq.s32.totalorder %s27, 0
      %p210 = por %p208, %p209
      %p211 = scmp.ne.s32.totalorder %s199, %s200
      %p212 = scmp.eq.s32.totalorder %s28, 1
      %p213 = por %p211, %p212
      %p215 = scmp.ne.s32.totalorder %s200, %s214
      %p216 = scmp.eq.s32.totalorder %s28, 0
      %p217 = por %p215, %p216
      %s219 = sadd.s32 %s218, 1
      %p222 = scmp.eq.s32.totalorder %s22, 1
      %p223 = scmp.ne.s32.totalorder %s218, %s220
      %p224 = scmp.eq.s32.totalorder %s22, 0
      %p225 = por %p223, %p224
      %p226 = scmp.ne.s32.totalorder %s218, %s220
      %p227 = scmp.eq.s32.totalorder %s27, 1
      %p228 = por %p226, %p227
      %p229 = scmp.ne.s32.totalorder %s220, %s221
      %p230 = scmp.eq.s32.totalorder %s27, 0
      %p231 = por %p229, %p230
      %p232 = scmp.ne.s32.totalorder %s220, %s221
      %p233 = scmp.eq.s32.totalorder %s28, 1
      %p234 = por %p232, %p233
      %p236 = scmp.ne.s32.totalorder %s221, %s235
      %p237 = scmp.eq.s32.totalorder %s28, 0
      %p238 = por %p236, %p237
      %s240 = sadd.s32 %s239, 1
      %p243 = scmp.eq.s32.totalorder %s22, 1
      %p244 = scmp.ne.s32.totalorder %s239, %s241
      %p245 = scmp.eq.s32.totalorder %s22, 0
      %p246 = por %p244, %p245
      %p247 = scmp.ne.s32.totalorder %s239, %s241
      %p248 = scmp.eq.s32.totalorder %s27, 1
      %p249 = por %p247, %p248
      %p250 = scmp.ne.s32.totalorder %s241, %s242
      %p251 = scmp.eq.s32.totalorder %s27, 0
      %p252 = por %p250, %p251
      %p253 = scmp.ne.s32.totalorder %s241, %s242
      %p254 = scmp.eq.s32.totalorder %s28, 1
      %p255 = por %p253, %p254
      %p257 = scmp.ne.s32.totalorder %s242, %s256
      %p258 = scmp.eq.s32.totalorder %s28, 0
      %p259 = por %p257, %p258
      %s261 = sadd.s32 %s260, 1
      %p264 = scmp.eq.s32.totalorder %s22, 1
      %p265 = scmp.ne.s32.totalorder %s260, %s262
      %p266 = scmp.eq.s32.totalorder %s22, 0
      %p267 = por %p265, %p266
      %p268 = scmp.ne.s32.totalorder %s260, %s262
      %p269 = scmp.eq.s32.totalorder %s27, 1
      %p270 = por %p268, %p269
      %p271 = scmp.ne.s32.totalorder %s262, %s263
      %p272 = scmp.eq.s32.totalorder %s27, 0
      %p273 = por %p271, %p272
      %p274 = scmp.ne.s32.totalorder %s262, %s263
      %p275 = scmp.eq.s32.totalorder %s28, 1
      %p276 = por %p274, %p275
      %p278 = scmp.ne.s32.totalorder %s263, %s277
      %p279 = scmp.eq.s32.totalorder %s28, 0
      %p280 = por %p278, %p279
      %s282 = sadd.s32 %s281, 1
      %p285 = scmp.eq.s32.totalorder %s22, 1
      %p286 = scmp.ne.s32.totalorder %s281, %s283
      %p287 = scmp.eq.s32.totalorder %s22, 0
      %p288 = por %p286, %p287
      %p289 = scmp.ne.s32.totalorder %s281, %s283
      %p290 = scmp.eq.s32.totalorder %s27, 1
      %p291 = por %p289, %p290
      %p292 = scmp.ne.s32.totalorder %s283, %s284
      %p293 = scmp.eq.s32.totalorder %s27, 0
      %p294 = por %p292, %p293
      %p295 = scmp.ne.s32.totalorder %s283, %s284
      %p296 = scmp.eq.s32.totalorder %s28, 1
      %p297 = por %p295, %p296
      %p299 = scmp.ne.s32.totalorder %s284, %s298
      %p300 = scmp.eq.s32.totalorder %s28, 0
      %p301 = por %p299, %p300
      %s303 = sadd.s32 %s302, 1
      %p306 = scmp.eq.s32.totalorder %s22, 1
      %p307 = scmp.ne.s32.totalorder %s302, %s304
      %p308 = scmp.eq.s32.totalorder %s22, 0
      %p309 = por %p307, %p308
      %p310 = scmp.ne.s32.totalorder %s302, %s304
      %p311 = scmp.eq.s32.totalorder %s27, 1
      %p312 = por %p310, %p311
      %p313 = scmp.ne.s32.totalorder %s304, %s305
      %p314 = scmp.eq.s32.totalorder %s27, 0
      %p315 = por %p313, %p314
      %p316 = scmp.ne.s32.totalorder %s304, %s305
      %p317 = scmp.eq.s32.totalorder %s28, 1
      %p318 = por %p316, %p317
      %p320 = scmp.ne.s32.totalorder %s305, %s319
      %p321 = scmp.eq.s32.totalorder %s28, 0
      %p322 = por %p320, %p321
      %s323 = ssub.s32 %s22, %s29
      %p324 = scmp.eq.s32.totalorder %s323, 0
      %s326 = sadd.s32 %s325, 1
      %s327 = scalar_select %p324, %s325, %s326
      %p330 = pneg %p324
      %p331 = scmp.eq.s32.totalorder %s22, 1
      %p332 = por %p330, %p331
      %p333 = scmp.ne.s32.totalorder %s325, %s328
      %p334 = scmp.eq.s32.totalorder %s22, 0
      %p335 = por %p333, %p334
      %p336 = scmp.ne.s32.totalorder %s325, %s328
      %p337 = scmp.eq.s32.totalorder %s27, 1
      %p338 = por %p336, %p337
      %p339 = scmp.ne.s32.totalorder %s328, %s329
      %p340 = scmp.eq.s32.totalorder %s27, 0
      %p341 = por %p339, %p340
      %p342 = scmp.ne.s32.totalorder %s328, %s329
      %p343 = scmp.eq.s32.totalorder %s28, 1
      %p344 = por %p342, %p343
      %p346 = scmp.ne.s32.totalorder %s329, %s345
      %p347 = scmp.eq.s32.totalorder %s28, 0
      %p348 = por %p346, %p347
      %p349 = scmp.le.s32.totalorder 1, %s22
      %p350 = scmp.lt.s32.totalorder %s22, 3
      %p351 = pnand %p349, %p350
      %p352 = pneg %p351
      // Predicated region
      $region9: #{tpu_custom_call.1} parent=5 // pred_check
        _
      $region10: #{tpu_custom_call.1} parent=5 // pred_check_branch
        %354 = sbr.rel (%p351) target = $region12
      $region11: #{tpu_custom_call.1} parent=5 // pred_region
        %s355 = ssub.s32 %s22, 1
        // Predicated region
        $region13: #{tpu_custom_call.1} parent=11 // pred_check
          %p356 = pneg %p147
        $region14: #{tpu_custom_call.1} parent=11 // pred_check_branch
          %358 = sbr.rel (%p356) target = $region16
        $region15: #{tpu_custom_call.1} parent=11 // pred_region
          _
        $region16: #{tpu_custom_call.1} parent=11 // pred_fallthru
          _
        // Predicated region
        $region17: #{tpu_custom_call.1} parent=11 // pred_check
          %p359 = pneg %p168
        $region18: #{tpu_custom_call.1} parent=11 // pred_check_branch
          %361 = sbr.rel (%p359) target = $region20
        $region19: #{tpu_custom_call.1} parent=11 // pred_region
          _
        $region20: #{tpu_custom_call.1} parent=11 // pred_fallthru
          _
        // Predicated region
        $region21: #{tpu_custom_call.1} parent=11 // pred_check
          %p362 = pneg %p189
        $region22: #{tpu_custom_call.1} parent=11 // pred_check_branch
          %364 = sbr.rel (%p362) target = $region24
        $region23: #{tpu_custom_call.1} parent=11 // pred_region
          _
        $region24: #{tpu_custom_call.1} parent=11 // pred_fallthru
          _
        // Predicated region
        $region25: #{tpu_custom_call.1} parent=11 // pred_check
          %p365 = pneg %p210
        $region26: #{tpu_custom_call.1} parent=11 // pred_check_branch
          %367 = sbr.rel (%p365) target = $region28
        $region27: #{tpu_custom_call.1} parent=11 // pred_region
          _
        $region28: #{tpu_custom_call.1} parent=11 // pred_fallthru
          _
        // Predicated region
        $region29: #{tpu_custom_call.1} parent=11 // pred_check
          %p368 = pneg %p231
        $region30: #{tpu_custom_call.1} parent=11 // pred_check_branch
          %370 = sbr.rel (%p368) target = $region32
        $region31: #{tpu_custom_call.1} parent=11 // pred_region
          _
        $region32: #{tpu_custom_call.1} parent=11 // pred_fallthru
          _
        // Predicated region
        $region33: #{tpu_custom_call.1} parent=11 // pred_check
          %p371 = pneg %p252
        $region34: #{tpu_custom_call.1} parent=11 // pred_check_branch
          %373 = sbr.rel (%p371) target = $region36
        $region35: #{tpu_custom_call.1} parent=11 // pred_region
          _
        $region36: #{tpu_custom_call.1} parent=11 // pred_fallthru
          _
        // Predicated region
        $region37: #{tpu_custom_call.1} parent=11 // pred_check
          %p374 = pneg %p273
        $region38: #{tpu_custom_call.1} parent=11 // pred_check_branch
          %376 = sbr.rel (%p374) target = $region40
        $region39: #{tpu_custom_call.1} parent=11 // pred_region
          _
        $region40: #{tpu_custom_call.1} parent=11 // pred_fallthru
          _
        // Predicated region
        $region41: #{tpu_custom_call.1} parent=11 // pred_check
          %p377 = pneg %p294
        $region42: #{tpu_custom_call.1} parent=11 // pred_check_branch
          %379 = sbr.rel (%p377) target = $region44
        $region43: #{tpu_custom_call.1} parent=11 // pred_region
          _
        $region44: #{tpu_custom_call.1} parent=11 // pred_fallthru
          _
        // Predicated region
        $region45: #{tpu_custom_call.1} parent=11 // pred_check
          %p380 = pneg %p315
        $region46: #{tpu_custom_call.1} parent=11 // pred_check_branch
          %382 = sbr.rel (%p380) target = $region48
        $region47: #{tpu_custom_call.1} parent=11 // pred_region
          _
        $region48: #{tpu_custom_call.1} parent=11 // pred_fallthru
          _
      $region12: #{tpu_custom_call.1} parent=5 // pred_fallthru
        _
      %p383 = scmp.lt.s32.totalorder %s22, 2
      // Predicated region
      $region49: #{tpu_custom_call.1} parent=5 // pred_check
        %p384 = pneg %p383
      $region50: #{tpu_custom_call.1} parent=5 // pred_check_branch
        %386 = sbr.rel (%p384) target = $region52
      $region51: #{tpu_custom_call.1} parent=5 // pred_region
        // Predicated region
        $region53: #{tpu_custom_call.1} parent=51 // pred_check
          %p387 = pneg %p42
        $region54: #{tpu_custom_call.1} parent=51 // pred_check_branch
          %389 = sbr.rel (%p387) target = $region56
        $region55: #{tpu_custom_call.1} parent=51 // pred_region
          %s390 = smul.u32 16, %s22
          %p391 = scmp.lt.s32.totalorder %s390, 31
          %s392 = scalar_select %p391, %s390, 31
          %s393 = smul.addr %s392, 4
          %s394 = scalar_lea.vmem %s0, %s393
          %s395 = smul.u32 16, %s22
        $region56: #{tpu_custom_call.1} parent=51 // pred_fallthru
          _
        // Predicated region
        $region57: #{tpu_custom_call.1} parent=51 // pred_check
          %p396 = pneg %p68
        $region58: #{tpu_custom_call.1} parent=51 // pred_check_branch
          %398 = sbr.rel (%p396) target = $region60
        $region59: #{tpu_custom_call.1} parent=51 // pred_region
          %s399 = smul.u32 16, %s22
          %p400 = scmp.lt.s32.totalorder %s399, 31
          %s401 = scalar_select %p400, %s399, 31
          %s402 = smul.addr %s401, 4
          %s403 = scalar_lea.vmem %s1, %s402
          %s404 = smul.u32 16, %s22
        $region60: #{tpu_custom_call.1} parent=51 // pred_fallthru
          _
        // Predicated region
        $region61: #{tpu_custom_call.1} parent=51 // pred_check
          %p405 = pneg %p94
        $region62: #{tpu_custom_call.1} parent=51 // pred_check_branch
          %407 = sbr.rel (%p405) target = $region64
        $region63: #{tpu_custom_call.1} parent=51 // pred_region
          %s408 = smul.u32 16, %s22
          %p409 = scmp.lt.s32.totalorder %s408, 31
          %s410 = scalar_select %p409, %s408, 31
          %s411 = smul.addr %s410, 4
          %s412 = scalar_lea.vmem %s2, %s411
          %s413 = smul.u32 16, %s22
        $region64: #{tpu_custom_call.1} parent=51 // pred_fallthru
          _
        // Predicated region
        $region65: #{tpu_custom_call.1} parent=51 // pred_check
          %p414 = pneg %p120
        $region66: #{tpu_custom_call.1} parent=51 // pred_check_branch
          %416 = sbr.rel (%p414) target = $region68
        $region67: #{tpu_custom_call.1} parent=51 // pred_region
          %s417 = smul.u32 16, %s22
          %p418 = scmp.lt.s32.totalorder %s417, 31
          %s419 = scalar_select %p418, %s417, 31
          %s420 = smul.addr %s419, 4
          %s421 = scalar_lea.vmem %s3, %s420
          %s422 = smul.u32 16, %s22
        $region68: #{tpu_custom_call.1} parent=51 // pred_fallthru
          _
      $region52: #{tpu_custom_call.1} parent=5 // pred_fallthru
        _
      %p423 = scmp.le.s32.totalorder 1, %s22
      %p424 = scmp.lt.s32.totalorder %s22, 3
      %p425 = pnand %p423, %p424
      %p426 = pneg %p425
      // Predicated region
      $region69: #{tpu_custom_call.1} parent=5 // pred_check
        _
      $region70: #{tpu_custom_call.1} parent=5 // pred_check_branch
        %428 = sbr.rel (%p425) target = $region72
      $region71: #{tpu_custom_call.1} parent=5 // pred_region
        %s429 = ssub.s32 %s22, 1
        %s430 = smul.u32 16, %s27
        %p431 = scmp.lt.s32.totalorder %s430, 31
        %s432 = scalar_select %p431, %s430, 31
        %s433 = smul.addr %s432, 4
        %s434 = scalar_lea.vmem %s0, %s433
        %p435 = pneg %p48
        %p436 = pneg %p45
        %s437 = smul.u32 16, %s27
        %p438 = scmp.lt.s32.totalorder %s437, 31
        %s439 = scalar_select %p438, %s437, 31
        %s440 = smul.addr %s439, 4
        %s441 = scalar_lea.vmem %s1, %s440
        %p442 = pneg %p74
        %p443 = pneg %p71
        %s444 = smul.u32 16, %s27
        %p445 = scmp.lt.s32.totalorder %s444, 31
        %s446 = scalar_select %p445, %s444, 31
        %s447 = smul.addr %s446, 4
        %s448 = scalar_lea.vmem %s2, %s447
        %p449 = pneg %p100
        %p450 = pneg %p97
        %s451 = smul.u32 16, %s27
        %p452 = scmp.lt.s32.totalorder %s451, 31
        %s453 = scalar_select %p452, %s451, 31
        %s454 = smul.addr %s453, 4
        %s455 = scalar_lea.vmem %s3, %s454
        %p456 = pneg %p126
        %p457 = pneg %p123
        %p458 = pneg %p147
        %p459 = pneg %p144
        %p460 = pneg %p168
        %p461 = pneg %p165
        %p462 = pneg %p189
        %p463 = pneg %p186
        %p464 = pneg %p210
        %p465 = pneg %p207
        %p466 = pneg %p231
        %p467 = pneg %p228
        %p468 = pneg %p252
        %p469 = pneg %p249
        %p470 = pneg %p273
        %p471 = pneg %p270
        %p472 = pneg %p294
        %p473 = pneg %p291
        %p474 = pneg %p315
        %p475 = pneg %p312
        %p476 = pneg %p341
        %p477 = pneg %p338
        %s478 = sand.u32 %s328, 1
        %s479 = scalar_lea.sflag [#allocation3], %s478
        %s480 = sand.u32 %s328, 1
        %s481 = smul.addr %s480, 128
        %s482 = scalar_lea.vmem [#allocation2], %s481
        %s483 = smul.u32 16, %s27
        %p484 = scmp.lt.s32.totalorder %s483, 31
        %s485 = scalar_select %p484, %s483, 31
        %s486 = smul.addr %s485, 4
        %s487 = scalar_lea.vmem %s0, %s486
        %s488 = smul.u32 16, %s27
        %s489 = smul.u32 16, %s27
        %p490 = scmp.lt.s32.totalorder %s489, 31
        %s491 = scalar_select %p490, %s489, 31
        %s492 = smul.addr %s491, 4
        %s493 = scalar_lea.vmem %s1, %s492
        %s494 = smul.u32 16, %s27
        %s495 = smul.u32 16, %s27
        %p496 = scmp.lt.s32.totalorder %s495, 31
        %s497 = scalar_select %p496, %s495, 31
        %s498 = smul.addr %s497, 4
        %s499 = scalar_lea.vmem %s2, %s498
        %s500 = smul.u32 16, %s27
        %s501 = smul.u32 16, %s27
        %p502 = scmp.lt.s32.totalorder %s501, 31
        %s503 = scalar_select %p502, %s501, 31
        %s504 = smul.addr %s503, 4
        %s505 = scalar_lea.vmem %s3, %s504
        %s506 = smul.u32 16, %s27
        %s507 = smul.u32 16, %s27
        %v509 = vld [vmem:[%s487] sm:$0xf]
        %v510 = vld [vmem:[%s487 + $0x4] sm:$0xf]
        %v511 = vld [vmem:[%s487 + $0x8] sm:$0xf]
        %v512 = vld [vmem:[%s487 + $0xc] sm:$0xf]
        %v513 = vld [vmem:[%s487 + $0x10] sm:$0xf]
        %v514 = vld [vmem:[%s487 + $0x14] sm:$0xf]
        %v515 = vld [vmem:[%s487 + $0x18] sm:$0xf]
        %v516 = vld [vmem:[%s487 + $0x1c] sm:$0xf]
        %v517 = vld [vmem:[%s487 + $0x20] sm:$0xf]
        %v518 = vld [vmem:[%s487 + $0x24] sm:$0xf]
        %v519 = vld [vmem:[%s487 + $0x28] sm:$0xf]
        %v520 = vld [vmem:[%s487 + $0x2c] sm:$0xf]
        %v521 = vld [vmem:[%s487 + $0x30] sm:$0xf]
        %v522 = vld [vmem:[%s487 + $0x34] sm:$0xf]
        %v523 = vld [vmem:[%s487 + $0x38] sm:$0xf]
        %v524 = vld [vmem:[%s487 + $0x3c] sm:$0xf]
        %v525 = vld [vmem:[%s4] sm:$0xf]
        %v526 = vld [vmem:[%s4 + $0x4] sm:$0x1]
        %v543 = vunpack.c.l.b16 %v509
        %v544 = vunpack.c.l.b16 %v510
        %v545 = vunpack.c.l.b16 %v511
        %v546 = vunpack.c.l.b16 %v512
        %v547 = vunpack.c.l.b16 %v513
        %v548 = vunpack.c.l.b16 %v514
        %v549 = vunpack.c.l.b16 %v515
        %v550 = vunpack.c.l.b16 %v516
        %v551 = vunpack.c.l.b16 %v517
        %v552 = vunpack.c.l.b16 %v518
        %v553 = vunpack.c.l.b16 %v519
        %v554 = vunpack.c.l.b16 %v520
        %v555 = vunpack.c.l.b16 %v521
        %v556 = vunpack.c.l.b16 %v522
        %v557 = vunpack.c.l.b16 %v523
        %v558 = vunpack.c.l.b16 %v524
        %v559 = vpack.c.b16 %v544, %v543
        %v560 = vpack.c.b16 %v546, %v545
        %v561 = vpack.c.b16 %v548, %v547
        %v562 = vpack.c.b16 %v550, %v549
        %v563 = vpack.c.b16 %v552, %v551
        %v564 = vpack.c.b16 %v554, %v553
        %v565 = vpack.c.b16 %v556, %v555
        %v566 = vpack.c.b16 %v558, %v557
        %v569 = vunpack.c.l.b16 %v525
        %v570 = vunpack.c.l.b16 %v526
        %v571 = vpack.c.b16 %v570, %v569
        %vm572 = vcmask 72704
        %v574 = vsel %vm572, %v559, 0
        %v577 = vsel %vm572, %v560, 0
        %v580 = vsel %vm572, %v561, 0
        %v583 = vsel %vm572, %v562, 0
        %v586 = vsel %vm572, %v563, 0
        %v589 = vsel %vm572, %v564, 0
        %v592 = vsel %vm572, %v565, 0
        %v595 = vsel %vm572, %v566, 0
        %vm597 = vcmask 1043456
        %vm598 = vcmask 1044480
        %v599 = vsel %vm597, 4294967295, 65535
        %v600 = vsel %vm598, %v599, 0
        %v602 = vand.u32 %v571, %v600
        %604 = vmatprep.subr.bf16.mxu0 0
        %605 = vmatpush1.bf16.msra.mxu0 0
        %606 = vmatprep.subr.bf16.mxu0 0
        %607 = vmatpush1.bf16.msra.mxu0 0
        %608 = vmatprep.subr.bf16.mxu0 0
        %609 = vmatpush1.bf16.msra.mxu0 0
        %610 = vmatprep.subr.bf16.mxu0 0
        %611 = vmatpush1.bf16.msra.mxu0 0
        %612 = vmatprep.subr.bf16.mxu0 0
        %613 = vmatpush1.bf16.msra.mxu0 0
        %614 = vmatprep.subr.bf16.mxu0 0
        %615 = vmatpush1.bf16.msra.mxu0 0
        %616 = vmatprep.subr.bf16.mxu0 0
        %617 = vmatpush1.bf16.msra.mxu0 0
        %618 = vmatprep.subr.bf16.mxu0 0
        %619 = vmatpush1.bf16.msra.mxu0 %v602
        %620 = vmatprep.subr.bf16.mxu0 0
        %621 = vmatpush2.bf16.msra.mxu0 0
        %622 = vmatprep.subr.bf16.mxu0 0
        %623 = vmatpush2.bf16.msra.mxu0 0
        %624 = vmatprep.subr.bf16.mxu0 0
        %625 = vmatpush2.bf16.msra.mxu0 0
        %626 = vmatprep.subr.bf16.mxu0 0
        %627 = vmatpush2.bf16.msra.mxu0 0
        %628 = vmatprep.subr.bf16.mxu0 0
        %629 = vmatpush2.bf16.msra.mxu0 0
        %630 = vmatprep.subr.bf16.mxu0 0
        %631 = vmatpush2.bf16.msra.mxu0 0
        %632 = vmatprep.subr.bf16.mxu0 0
        %633 = vmatpush2.bf16.msra.mxu0 0
        %634 = vmatprep.subr.bf16.mxu0 0
        %635 = vmatpush2.bf16.msra.mxu0 0
        %636 = vmatprep.mubr.bf16.mxu0 0
        %637 = vmatmul.mubr.bf16.gmra.mxu0 %v574
        %v638 = vpop.f32.mrf.mxu0
        %v639 = vadd.f32 0.0, %v638
        %v640 = vpop.f32.mrf.mxu0
        %v641 = vpop.f32.mrf.mxu0
        %v642 = vadd.f32 0.0, %v641
        %v643 = vpop.f32.mrf.mxu0
        %644 = vmatprep.mubr.bf16.mxu0 0
        %645 = vmatmul.mubr.bf16.gmra.mxu0 %v577
        %v646 = vpop.f32.mrf.mxu0
        %v647 = vadd.f32 0.0, %v646
        %v648 = vpop.f32.mrf.mxu0
        %v649 = vpop.f32.mrf.mxu0
        %v650 = vadd.f32 0.0, %v649
        %v651 = vpop.f32.mrf.mxu0
        %652 = vmatprep.mubr.bf16.mxu0 0
        %653 = vmatmul.mubr.bf16.gmra.mxu0 %v580
        %v654 = vpop.f32.mrf.mxu0
        %v655 = vadd.f32 0.0, %v654
        %v656 = vpop.f32.mrf.mxu0
        %v657 = vpop.f32.mrf.mxu0
        %v658 = vadd.f32 0.0, %v657
        %v659 = vpop.f32.mrf.mxu0
        %660 = vmatprep.mubr.bf16.mxu0 0
        %661 = vmatmul.mubr.bf16.gmra.mxu0 %v583
        %v662 = vpop.f32.mrf.mxu0
        %v663 = vadd.f32 0.0, %v662
        %v664 = vpop.f32.mrf.mxu0
        %v665 = vpop.f32.mrf.mxu0
        %v666 = vadd.f32 0.0, %v665
        %v667 = vpop.f32.mrf.mxu0
        %668 = vmatprep.mubr.bf16.mxu0 0
        %669 = vmatmul.mubr.bf16.gmra.mxu0 %v586
        %v670 = vpop.f32.mrf.mxu0
        %v671 = vadd.f32 0.0, %v670
        %v672 = vpop.f32.mrf.mxu0
        %v673 = vpop.f32.mrf.mxu0
        %v674 = vadd.f32 0.0, %v673
        %v675 = vpop.f32.mrf.mxu0
        %676 = vmatprep.mubr.bf16.mxu0 0
        %677 = vmatmul.mubr.bf16.gmra.mxu0 %v589
        %v678 = vpop.f32.mrf.mxu0
        %v679 = vadd.f32 0.0, %v678
        %v680 = vpop.f32.mrf.mxu0
        %v681 = vpop.f32.mrf.mxu0
        %v682 = vadd.f32 0.0, %v681
        %v683 = vpop.f32.mrf.mxu0
        %684 = vmatprep.mubr.bf16.mxu0 0
        %685 = vmatmul.mubr.bf16.gmra.mxu0 %v592
        %v686 = vpop.f32.mrf.mxu0
        %v687 = vadd.f32 0.0, %v686
        %v688 = vpop.f32.mrf.mxu0
        %v689 = vpop.f32.mrf.mxu0
        %v690 = vadd.f32 0.0, %v689
        %v691 = vpop.f32.mrf.mxu0
        %692 = vmatprep.mubr.bf16.mxu0 0
        %693 = vmatmul.mubr.bf16.gmra.mxu0 %v595
        %v694 = vpop.f32.mrf.mxu0
        %v695 = vadd.f32 0.0, %v694
        %v696 = vpop.f32.mrf.mxu0
        %v697 = vpop.f32.mrf.mxu0
        %v698 = vadd.f32 0.0, %v697
        %v699 = vpop.f32.mrf.mxu0
        %700 = vdwg.mxu0
        %v701 = vmax.f32 %v639, 0.0
        %v702 = vmax.f32 %v642, 0.0
        %v703 = vmax.f32 %v647, 0.0
        %v704 = vmax.f32 %v650, 0.0
        %v705 = vmax.f32 %v655, 0.0
        %v706 = vmax.f32 %v658, 0.0
        %v707 = vmax.f32 %v663, 0.0
        %v708 = vmax.f32 %v666, 0.0
        %v709 = vmax.f32 %v671, 0.0
        %v710 = vmax.f32 %v674, 0.0
        %v711 = vmax.f32 %v679, 0.0
        %v712 = vmax.f32 %v682, 0.0
        %v713 = vmax.f32 %v687, 0.0
        %v714 = vmax.f32 %v690, 0.0
        %v715 = vmax.f32 %v695, 0.0
        %v716 = vmax.f32 %v698, 0.0
        %v717 = vpack.c.bf16 %v702, %v701
        %v718 = vpack.c.bf16 %v704, %v703
        %v719 = vpack.c.bf16 %v706, %v705
        %v720 = vpack.c.bf16 %v708, %v707
        %v721 = vpack.c.bf16 %v710, %v709
        %v722 = vpack.c.bf16 %v712, %v711
        %v723 = vpack.c.bf16 %v714, %v713
        %v724 = vpack.c.bf16 %v716, %v715
        %v725 = vld [vmem:[%s5] sm:$0x7]
        %v726 = vld [vmem:[%s493] sm:$0xf]
        %v727 = vld [vmem:[%s493 + $0x4] sm:$0xf]
        %v728 = vld [vmem:[%s493 + $0x8] sm:$0xf]
        %v729 = vld [vmem:[%s493 + $0xc] sm:$0xf]
        %v730 = vld [vmem:[%s493 + $0x10] sm:$0xf]
        %v731 = vld [vmem:[%s493 + $0x14] sm:$0xf]
        %v732 = vld [vmem:[%s493 + $0x18] sm:$0xf]
        %v733 = vld [vmem:[%s493 + $0x1c] sm:$0xf]
        %v734 = vld [vmem:[%s493 + $0x20] sm:$0xf]
        %v735 = vld [vmem:[%s493 + $0x24] sm:$0xf]
        %v736 = vld [vmem:[%s493 + $0x28] sm:$0xf]
        %v737 = vld [vmem:[%s493 + $0x2c] sm:$0xf]
        %v738 = vld [vmem:[%s493 + $0x30] sm:$0xf]
        %v739 = vld [vmem:[%s493 + $0x34] sm:$0xf]
        %v740 = vld [vmem:[%s493 + $0x38] sm:$0xf]
        %v741 = vld [vmem:[%s493 + $0x3c] sm:$0xf]
        %v742 = vld [vmem:[%s6] sm:$0xf]
        %v743 = vld [vmem:[%s6 + $0x4] sm:$0x1]
        %v760 = vunpack.c.l.b16 %v726
        %v761 = vunpack.c.l.b16 %v727
        %v762 = vunpack.c.l.b16 %v728
        %v763 = vunpack.c.l.b16 %v729
        %v764 = vunpack.c.l.b16 %v730
        %v765 = vunpack.c.l.b16 %v731
        %v766 = vunpack.c.l.b16 %v732
        %v767 = vunpack.c.l.b16 %v733
        %v768 = vunpack.c.l.b16 %v734
        %v769 = vunpack.c.l.b16 %v735
        %v770 = vunpack.c.l.b16 %v736
        %v771 = vunpack.c.l.b16 %v737
        %v772 = vunpack.c.l.b16 %v738
        %v773 = vunpack.c.l.b16 %v739
        %v774 = vunpack.c.l.b16 %v740
        %v775 = vunpack.c.l.b16 %v741
        %v776 = vpack.c.b16 %v761, %v760
        %v777 = vpack.c.b16 %v763, %v762
        %v778 = vpack.c.b16 %v765, %v764
        %v779 = vpack.c.b16 %v767, %v766
        %v780 = vpack.c.b16 %v769, %v768
        %v781 = vpack.c.b16 %v771, %v770
        %v782 = vpack.c.b16 %v773, %v772
        %v783 = vpack.c.b16 %v775, %v774
        %v786 = vunpack.c.l.b16 %v742
        %v787 = vunpack.c.l.b16 %v743
        %v788 = vpack.c.b16 %v787, %v786
        %v790 = vsel %vm572, %v776, 0
        %v793 = vsel %vm572, %v777, 0
        %v796 = vsel %vm572, %v778, 0
        %v799 = vsel %vm572, %v779, 0
        %v802 = vsel %vm572, %v780, 0
        %v805 = vsel %vm572, %v781, 0
        %v808 = vsel %vm572, %v782, 0
        %v811 = vsel %vm572, %v783, 0
        %v814 = vand.u32 %v788, %v600
        %816 = vmatprep.subr.bf16.mxu0 0
        %817 = vmatpush1.bf16.msra.mxu0 0
        %818 = vmatprep.subr.bf16.mxu0 0
        %819 = vmatpush1.bf16.msra.mxu0 0
        %820 = vmatprep.subr.bf16.mxu0 0
        %821 = vmatpush1.bf16.msra.mxu0 0
        %822 = vmatprep.subr.bf16.mxu0 0
        %823 = vmatpush1.bf16.msra.mxu0 0
        %824 = vmatprep.subr.bf16.mxu0 0
        %825 = vmatpush1.bf16.msra.mxu0 0
        %826 = vmatprep.subr.bf16.mxu0 0
        %827 = vmatpush1.bf16.msra.mxu0 0
        %828 = vmatprep.subr.bf16.mxu0 0
        %829 = vmatpush1.bf16.msra.mxu0 0
        %830 = vmatprep.subr.bf16.mxu0 0
        %831 = vmatpush1.bf16.msra.mxu0 %v814
        %832 = vmatprep.subr.bf16.mxu0 0
        %833 = vmatpush2.bf16.msra.mxu0 0
        %834 = vmatprep.subr.bf16.mxu0 0
        %835 = vmatpush2.bf16.msra.mxu0 0
        %836 = vmatprep.subr.bf16.mxu0 0
        %837 = vmatpush2.bf16.msra.mxu0 0
        %838 = vmatprep.subr.bf16.mxu0 0
        %839 = vmatpush2.bf16.msra.mxu0 0
        %840 = vmatprep.subr.bf16.mxu0 0
        %841 = vmatpush2.bf16.msra.mxu0 0
        %842 = vmatprep.subr.bf16.mxu0 0
        %843 = vmatpush2.bf16.msra.mxu0 0
        %844 = vmatprep.subr.bf16.mxu0 0
        %845 = vmatpush2.bf16.msra.mxu0 0
        %846 = vmatprep.subr.bf16.mxu0 0
        %847 = vmatpush2.bf16.msra.mxu0 0
        %848 = vmatprep.mubr.bf16.mxu0 0
        %849 = vmatmul.mubr.bf16.gmra.mxu0 %v790
        %v850 = vpop.f32.mrf.mxu0
        %v851 = vadd.f32 0.0, %v850
        %v852 = vpop.f32.mrf.mxu0
        %v853 = vpop.f32.mrf.mxu0
        %v854 = vadd.f32 0.0, %v853
        %v855 = vpop.f32.mrf.mxu0
        %856 = vmatprep.mubr.bf16.mxu0 0
        %857 = vmatmul.mubr.bf16.gmra.mxu0 %v793
        %v858 = vpop.f32.mrf.mxu0
        %v859 = vadd.f32 0.0, %v858
        %v860 = vpop.f32.mrf.mxu0
        %v861 = vpop.f32.mrf.mxu0
        %v862 = vadd.f32 0.0, %v861
        %v863 = vpop.f32.mrf.mxu0
        %864 = vmatprep.mubr.bf16.mxu0 0
        %865 = vmatmul.mubr.bf16.gmra.mxu0 %v796
        %v866 = vpop.f32.mrf.mxu0
        %v867 = vadd.f32 0.0, %v866
        %v868 = vpop.f32.mrf.mxu0
        %v869 = vpop.f32.mrf.mxu0
        %v870 = vadd.f32 0.0, %v869
        %v871 = vpop.f32.mrf.mxu0
        %872 = vmatprep.mubr.bf16.mxu0 0
        %873 = vmatmul.mubr.bf16.gmra.mxu0 %v799
        %v874 = vpop.f32.mrf.mxu0
        %v875 = vadd.f32 0.0, %v874
        %v876 = vpop.f32.mrf.mxu0
        %v877 = vpop.f32.mrf.mxu0
        %v878 = vadd.f32 0.0, %v877
        %v879 = vpop.f32.mrf.mxu0
        %880 = vmatprep.mubr.bf16.mxu0 0
        %881 = vmatmul.mubr.bf16.gmra.mxu0 %v802
        %v882 = vpop.f32.mrf.mxu0
        %v883 = vadd.f32 0.0, %v882
        %v884 = vpop.f32.mrf.mxu0
        %v885 = vpop.f32.mrf.mxu0
        %v886 = vadd.f32 0.0, %v885
        %v887 = vpop.f32.mrf.mxu0
        %888 = vmatprep.mubr.bf16.mxu0 0
        %889 = vmatmul.mubr.bf16.gmra.mxu0 %v805
        %v890 = vpop.f32.mrf.mxu0
        %v891 = vadd.f32 0.0, %v890
        %v892 = vpop.f32.mrf.mxu0
        %v893 = vpop.f32.mrf.mxu0
        %v894 = vadd.f32 0.0, %v893
        %v895 = vpop.f32.mrf.mxu0
        %896 = vmatprep.mubr.bf16.mxu0 0
        %897 = vmatmul.mubr.bf16.gmra.mxu0 %v808
        %v898 = vpop.f32.mrf.mxu0
        %v899 = vadd.f32 0.0, %v898
        %v900 = vpop.f32.mrf.mxu0
        %v901 = vpop.f32.mrf.mxu0
        %v902 = vadd.f32 0.0, %v901
        %v903 = vpop.f32.mrf.mxu0
        %904 = vmatprep.mubr.bf16.mxu0 0
        %905 = vmatmul.mubr.bf16.gmra.mxu0 %v811
        %v906 = vpop.f32.mrf.mxu0
        %v907 = vadd.f32 0.0, %v906
        %v908 = vpop.f32.mrf.mxu0
        %v909 = vpop.f32.mrf.mxu0
        %v910 = vadd.f32 0.0, %v909
        %v911 = vpop.f32.mrf.mxu0
        %912 = vdwg.mxu0
        %v913 = vmax.f32 %v851, 0.0
        %v914 = vmax.f32 %v854, 0.0
        %v915 = vmax.f32 %v859, 0.0
        %v916 = vmax.f32 %v862, 0.0
        %v917 = vmax.f32 %v867, 0.0
        %v918 = vmax.f32 %v870, 0.0
        %v919 = vmax.f32 %v875, 0.0
        %v920 = vmax.f32 %v878, 0.0
        %v921 = vmax.f32 %v883, 0.0
        %v922 = vmax.f32 %v886, 0.0
        %v923 = vmax.f32 %v891, 0.0
        %v924 = vmax.f32 %v894, 0.0
        %v925 = vmax.f32 %v899, 0.0
        %v926 = vmax.f32 %v902, 0.0
        %v927 = vmax.f32 %v907, 0.0
        %v928 = vmax.f32 %v910, 0.0
        %v929 = vpack.c.bf16 %v914, %v913
        %v930 = vpack.c.bf16 %v916, %v915
        %v931 = vpack.c.bf16 %v918, %v917
        %v932 = vpack.c.bf16 %v920, %v919
        %v933 = vpack.c.bf16 %v922, %v921
        %v934 = vpack.c.bf16 %v924, %v923
        %v935 = vpack.c.bf16 %v926, %v925
        %v936 = vpack.c.bf16 %v928, %v927
        %v937 = vld [vmem:[%s7] sm:$0xf]
        %v938 = vld [vmem:[%s7 + $0x4] sm:$0x1]
        %v941 = vunpack.c.l.b16 %v937
        %v942 = vunpack.c.l.b16 %v938
        %v943 = vpack.c.b16 %v942, %v941
        %v945 = vsel %vm572, %v929, 0
        %v948 = vsel %vm572, %v930, 0
        %v951 = vsel %vm572, %v931, 0
        %v954 = vsel %vm572, %v932, 0
        %v957 = vsel %vm572, %v933, 0
        %v960 = vsel %vm572, %v934, 0
        %v963 = vsel %vm572, %v935, 0
        %v966 = vsel %vm572, %v936, 0
        %v969 = vand.u32 %v943, %v600
        %971 = vmatprep.subr.bf16.mxu0 0
        %972 = vmatpush1.bf16.msra.mxu0 0
        %973 = vmatprep.subr.bf16.mxu0 0
        %974 = vmatpush1.bf16.msra.mxu0 0
        %975 = vmatprep.subr.bf16.mxu0 0
        %976 = vmatpush1.bf16.msra.mxu0 0
        %977 = vmatprep.subr.bf16.mxu0 0
        %978 = vmatpush1.bf16.msra.mxu0 0
        %979 = vmatprep.subr.bf16.mxu0 0
        %980 = vmatpush1.bf16.msra.mxu0 0
        %981 = vmatprep.subr.bf16.mxu0 0
        %982 = vmatpush1.bf16.msra.mxu0 0
        %983 = vmatprep.subr.bf16.mxu0 0
        %984 = vmatpush1.bf16.msra.mxu0 0
        %985 = vmatprep.subr.bf16.mxu0 0
        %986 = vmatpush1.bf16.msra.mxu0 %v969
        %987 = vmatprep.subr.bf16.mxu0 0
        %988 = vmatpush2.bf16.msra.mxu0 0
        %989 = vmatprep.subr.bf16.mxu0 0
        %990 = vmatpush2.bf16.msra.mxu0 0
        %991 = vmatprep.subr.bf16.mxu0 0
        %992 = vmatpush2.bf16.msra.mxu0 0
        %993 = vmatprep.subr.bf16.mxu0 0
        %994 = vmatpush2.bf16.msra.mxu0 0
        %995 = vmatprep.subr.bf16.mxu0 0
        %996 = vmatpush2.bf16.msra.mxu0 0
        %997 = vmatprep.subr.bf16.mxu0 0
        %998 = vmatpush2.bf16.msra.mxu0 0
        %999 = vmatprep.subr.bf16.mxu0 0
        %1000 = vmatpush2.bf16.msra.mxu0 0
        %1001 = vmatprep.subr.bf16.mxu0 0
        %1002 = vmatpush2.bf16.msra.mxu0 0
        %1003 = vmatprep.mubr.bf16.mxu0 0
        %1004 = vmatmul.mubr.bf16.gmra.mxu0 %v945
        %v1005 = vpop.f32.mrf.mxu0
        %v1006 = vadd.f32 0.0, %v1005
        %v1007 = vpop.f32.mrf.mxu0
        %v1008 = vpop.f32.mrf.mxu0
        %v1009 = vadd.f32 0.0, %v1008
        %v1010 = vpop.f32.mrf.mxu0
        %1011 = vmatprep.mubr.bf16.mxu0 0
        %1012 = vmatmul.mubr.bf16.gmra.mxu0 %v948
        %v1013 = vpop.f32.mrf.mxu0
        %v1014 = vadd.f32 0.0, %v1013
        %v1015 = vpop.f32.mrf.mxu0
        %v1016 = vpop.f32.mrf.mxu0
        %v1017 = vadd.f32 0.0, %v1016
        %v1018 = vpop.f32.mrf.mxu0
        %1019 = vmatprep.mubr.bf16.mxu0 0
        %1020 = vmatmul.mubr.bf16.gmra.mxu0 %v951
        %v1021 = vpop.f32.mrf.mxu0
        %v1022 = vadd.f32 0.0, %v1021
        %v1023 = vpop.f32.mrf.mxu0
        %v1024 = vpop.f32.mrf.mxu0
        %v1025 = vadd.f32 0.0, %v1024
        %v1026 = vpop.f32.mrf.mxu0
        %1027 = vmatprep.mubr.bf16.mxu0 0
        %1028 = vmatmul.mubr.bf16.gmra.mxu0 %v954
        %v1029 = vpop.f32.mrf.mxu0
        %v1030 = vadd.f32 0.0, %v1029
        %v1031 = vpop.f32.mrf.mxu0
        %v1032 = vpop.f32.mrf.mxu0
        %v1033 = vadd.f32 0.0, %v1032
        %v1034 = vpop.f32.mrf.mxu0
        %1035 = vmatprep.mubr.bf16.mxu0 0
        %1036 = vmatmul.mubr.bf16.gmra.mxu0 %v957
        %v1037 = vpop.f32.mrf.mxu0
        %v1038 = vadd.f32 0.0, %v1037
        %v1039 = vpop.f32.mrf.mxu0
        %v1040 = vpop.f32.mrf.mxu0
        %v1041 = vadd.f32 0.0, %v1040
        %v1042 = vpop.f32.mrf.mxu0
        %1043 = vmatprep.mubr.bf16.mxu0 0
        %1044 = vmatmul.mubr.bf16.gmra.mxu0 %v960
        %v1045 = vpop.f32.mrf.mxu0
        %v1046 = vadd.f32 0.0, %v1045
        %v1047 = vpop.f32.mrf.mxu0
        %v1048 = vpop.f32.mrf.mxu0
        %v1049 = vadd.f32 0.0, %v1048
        %v1050 = vpop.f32.mrf.mxu0
        %1051 = vmatprep.mubr.bf16.mxu0 0
        %1052 = vmatmul.mubr.bf16.gmra.mxu0 %v963
        %v1053 = vpop.f32.mrf.mxu0
        %v1054 = vadd.f32 0.0, %v1053
        %v1055 = vpop.f32.mrf.mxu0
        %v1056 = vpop.f32.mrf.mxu0
        %v1057 = vadd.f32 0.0, %v1056
        %v1058 = vpop.f32.mrf.mxu0
        %1059 = vmatprep.mubr.bf16.mxu0 0
        %1060 = vmatmul.mubr.bf16.gmra.mxu0 %v966
        %v1061 = vpop.f32.mrf.mxu0
        %v1062 = vadd.f32 0.0, %v1061
        %v1063 = vpop.f32.mrf.mxu0
        %v1064 = vpop.f32.mrf.mxu0
        %v1065 = vadd.f32 0.0, %v1064
        %v1066 = vpop.f32.mrf.mxu0
        %1067 = vdwg.mxu0
        %v1068 = vld [vmem:[%s499] sm:$0xf]
        %v1069 = vld [vmem:[%s499 + $0x4] sm:$0xf]
        %v1070 = vld [vmem:[%s499 + $0x8] sm:$0xf]
        %v1071 = vld [vmem:[%s499 + $0xc] sm:$0xf]
        %v1072 = vld [vmem:[%s499 + $0x10] sm:$0xf]
        %v1073 = vld [vmem:[%s499 + $0x14] sm:$0xf]
        %v1074 = vld [vmem:[%s499 + $0x18] sm:$0xf]
        %v1075 = vld [vmem:[%s499 + $0x1c] sm:$0xf]
        %v1076 = vld [vmem:[%s499 + $0x20] sm:$0xf]
        %v1077 = vld [vmem:[%s499 + $0x24] sm:$0xf]
        %v1078 = vld [vmem:[%s499 + $0x28] sm:$0xf]
        %v1079 = vld [vmem:[%s499 + $0x2c] sm:$0xf]
        %v1080 = vld [vmem:[%s499 + $0x30] sm:$0xf]
        %v1081 = vld [vmem:[%s499 + $0x34] sm:$0xf]
        %v1082 = vld [vmem:[%s499 + $0x38] sm:$0xf]
        %v1083 = vld [vmem:[%s499 + $0x3c] sm:$0xf]
        %v1084 = vld [vmem:[%s8] sm:$0xf]
        %v1085 = vld [vmem:[%s8 + $0x4] sm:$0x1]
        %v1102 = vunpack.c.l.b16 %v1068
        %v1103 = vunpack.c.l.b16 %v1069
        %v1104 = vunpack.c.l.b16 %v1070
        %v1105 = vunpack.c.l.b16 %v1071
        %v1106 = vunpack.c.l.b16 %v1072
        %v1107 = vunpack.c.l.b16 %v1073
        %v1108 = vunpack.c.l.b16 %v1074
        %v1109 = vunpack.c.l.b16 %v1075
        %v1110 = vunpack.c.l.b16 %v1076
        %v1111 = vunpack.c.l.b16 %v1077
        %v1112 = vunpack.c.l.b16 %v1078
        %v1113 = vunpack.c.l.b16 %v1079
        %v1114 = vunpack.c.l.b16 %v1080
        %v1115 = vunpack.c.l.b16 %v1081
        %v1116 = vunpack.c.l.b16 %v1082
        %v1117 = vunpack.c.l.b16 %v1083
        %v1118 = vpack.c.b16 %v1103, %v1102
        %v1119 = vpack.c.b16 %v1105, %v1104
        %v1120 = vpack.c.b16 %v1107, %v1106
        %v1121 = vpack.c.b16 %v1109, %v1108
        %v1122 = vpack.c.b16 %v1111, %v1110
        %v1123 = vpack.c.b16 %v1113, %v1112
        %v1124 = vpack.c.b16 %v1115, %v1114
        %v1125 = vpack.c.b16 %v1117, %v1116
        %v1128 = vunpack.c.l.b16 %v1084
        %v1129 = vunpack.c.l.b16 %v1085
        %v1130 = vpack.c.b16 %v1129, %v1128
        %v1132 = vsel %vm572, %v1118, 0
        %v1135 = vsel %vm572, %v1119, 0
        %v1138 = vsel %vm572, %v1120, 0
        %v1141 = vsel %vm572, %v1121, 0
        %v1144 = vsel %vm572, %v1122, 0
        %v1147 = vsel %vm572, %v1123, 0
        %v1150 = vsel %vm572, %v1124, 0
        %v1153 = vsel %vm572, %v1125, 0
        %v1156 = vand.u32 %v1130, %v600
        %1158 = vmatprep.subr.bf16.mxu0 0
        %1159 = vmatpush1.bf16.msra.mxu0 0
        %1160 = vmatprep.subr.bf16.mxu0 0
        %1161 = vmatpush1.bf16.msra.mxu0 0
        %1162 = vmatprep.subr.bf16.mxu0 0
        %1163 = vmatpush1.bf16.msra.mxu0 0
        %1164 = vmatprep.subr.bf16.mxu0 0
        %1165 = vmatpush1.bf16.msra.mxu0 0
        %1166 = vmatprep.subr.bf16.mxu0 0
        %1167 = vmatpush1.bf16.msra.mxu0 0
        %1168 = vmatprep.subr.bf16.mxu0 0
        %1169 = vmatpush1.bf16.msra.mxu0 0
        %1170 = vmatprep.subr.bf16.mxu0 0
        %1171 = vmatpush1.bf16.msra.mxu0 0
        %1172 = vmatprep.subr.bf16.mxu0 0
        %1173 = vmatpush1.bf16.msra.mxu0 %v1156
        %1174 = vmatprep.subr.bf16.mxu0 0
        %1175 = vmatpush2.bf16.msra.mxu0 0
        %1176 = vmatprep.subr.bf16.mxu0 0
        %1177 = vmatpush2.bf16.msra.mxu0 0
        %1178 = vmatprep.subr.bf16.mxu0 0
        %1179 = vmatpush2.bf16.msra.mxu0 0
        %1180 = vmatprep.subr.bf16.mxu0 0
        %1181 = vmatpush2.bf16.msra.mxu0 0
        %1182 = vmatprep.subr.bf16.mxu0 0
        %1183 = vmatpush2.bf16.msra.mxu0 0
        %1184 = vmatprep.subr.bf16.mxu0 0
        %1185 = vmatpush2.bf16.msra.mxu0 0
        %1186 = vmatprep.subr.bf16.mxu0 0
        %1187 = vmatpush2.bf16.msra.mxu0 0
        %1188 = vmatprep.subr.bf16.mxu0 0
        %1189 = vmatpush2.bf16.msra.mxu0 0
        %1190 = vmatprep.mubr.bf16.mxu0 0
        %1191 = vmatmul.mubr.bf16.gmra.mxu0 %v1132
        %v1192 = vpop.f32.mrf.mxu0
        %v1193 = vadd.f32 0.0, %v1192
        %v1194 = vpop.f32.mrf.mxu0
        %v1195 = vpop.f32.mrf.mxu0
        %v1196 = vadd.f32 0.0, %v1195
        %v1197 = vpop.f32.mrf.mxu0
        %1198 = vmatprep.mubr.bf16.mxu0 0
        %1199 = vmatmul.mubr.bf16.gmra.mxu0 %v1135
        %v1200 = vpop.f32.mrf.mxu0
        %v1201 = vadd.f32 0.0, %v1200
        %v1202 = vpop.f32.mrf.mxu0
        %v1203 = vpop.f32.mrf.mxu0
        %v1204 = vadd.f32 0.0, %v1203
        %v1205 = vpop.f32.mrf.mxu0
        %1206 = vmatprep.mubr.bf16.mxu0 0
        %1207 = vmatmul.mubr.bf16.gmra.mxu0 %v1138
        %v1208 = vpop.f32.mrf.mxu0
        %v1209 = vadd.f32 0.0, %v1208
        %v1210 = vpop.f32.mrf.mxu0
        %v1211 = vpop.f32.mrf.mxu0
        %v1212 = vadd.f32 0.0, %v1211
        %v1213 = vpop.f32.mrf.mxu0
        %1214 = vmatprep.mubr.bf16.mxu0 0
        %1215 = vmatmul.mubr.bf16.gmra.mxu0 %v1141
        %v1216 = vpop.f32.mrf.mxu0
        %v1217 = vadd.f32 0.0, %v1216
        %v1218 = vpop.f32.mrf.mxu0
        %v1219 = vpop.f32.mrf.mxu0
        %v1220 = vadd.f32 0.0, %v1219
        %v1221 = vpop.f32.mrf.mxu0
        %1222 = vmatprep.mubr.bf16.mxu0 0
        %1223 = vmatmul.mubr.bf16.gmra.mxu0 %v1144
        %v1224 = vpop.f32.mrf.mxu0
        %v1225 = vadd.f32 0.0, %v1224
        %v1226 = vpop.f32.mrf.mxu0
        %v1227 = vpop.f32.mrf.mxu0
        %v1228 = vadd.f32 0.0, %v1227
        %v1229 = vpop.f32.mrf.mxu0
        %1230 = vmatprep.mubr.bf16.mxu0 0
        %1231 = vmatmul.mubr.bf16.gmra.mxu0 %v1147
        %v1232 = vpop.f32.mrf.mxu0
        %v1233 = vadd.f32 0.0, %v1232
        %v1234 = vpop.f32.mrf.mxu0
        %v1235 = vpop.f32.mrf.mxu0
        %v1236 = vadd.f32 0.0, %v1235
        %v1237 = vpop.f32.mrf.mxu0
        %1238 = vmatprep.mubr.bf16.mxu0 0
        %1239 = vmatmul.mubr.bf16.gmra.mxu0 %v1150
        %v1240 = vpop.f32.mrf.mxu0
        %v1241 = vadd.f32 0.0, %v1240
        %v1242 = vpop.f32.mrf.mxu0
        %v1243 = vpop.f32.mrf.mxu0
        %v1244 = vadd.f32 0.0, %v1243
        %v1245 = vpop.f32.mrf.mxu0
        %1246 = vmatprep.mubr.bf16.mxu0 0
        %1247 = vmatmul.mubr.bf16.gmra.mxu0 %v1153
        %v1248 = vpop.f32.mrf.mxu0
        %v1249 = vadd.f32 0.0, %v1248
        %v1250 = vpop.f32.mrf.mxu0
        %v1251 = vpop.f32.mrf.mxu0
        %v1252 = vadd.f32 0.0, %v1251
        %v1253 = vpop.f32.mrf.mxu0
        %1254 = vdwg.mxu0
        %v1255 = vld [vmem:[%s505] sm:$0xf]
        %v1256 = vld [vmem:[%s505 + $0x4] sm:$0xf]
        %v1257 = vld [vmem:[%s505 + $0x8] sm:$0xf]
        %v1258 = vld [vmem:[%s505 + $0xc] sm:$0xf]
        %v1259 = vld [vmem:[%s505 + $0x10] sm:$0xf]
        %v1260 = vld [vmem:[%s505 + $0x14] sm:$0xf]
        %v1261 = vld [vmem:[%s505 + $0x18] sm:$0xf]
        %v1262 = vld [vmem:[%s505 + $0x1c] sm:$0xf]
        %v1263 = vld [vmem:[%s505 + $0x20] sm:$0xf]
        %v1264 = vld [vmem:[%s505 + $0x24] sm:$0xf]
        %v1265 = vld [vmem:[%s505 + $0x28] sm:$0xf]
        %v1266 = vld [vmem:[%s505 + $0x2c] sm:$0xf]
        %v1267 = vld [vmem:[%s505 + $0x30] sm:$0xf]
        %v1268 = vld [vmem:[%s505 + $0x34] sm:$0xf]
        %v1269 = vld [vmem:[%s505 + $0x38] sm:$0xf]
        %v1270 = vld [vmem:[%s505 + $0x3c] sm:$0xf]
        %v1271 = vld [vmem:[%s9] sm:$0xf]
        %v1272 = vld [vmem:[%s9 + $0x4] sm:$0x1]
        %v1289 = vunpack.c.l.b16 %v1255
        %v1290 = vunpack.c.l.b16 %v1256
        %v1291 = vunpack.c.l.b16 %v1257
        %v1292 = vunpack.c.l.b16 %v1258
        %v1293 = vunpack.c.l.b16 %v1259
        %v1294 = vunpack.c.l.b16 %v1260
        %v1295 = vunpack.c.l.b16 %v1261
        %v1296 = vunpack.c.l.b16 %v1262
        %v1297 = vunpack.c.l.b16 %v1263
        %v1298 = vunpack.c.l.b16 %v1264
        %v1299 = vunpack.c.l.b16 %v1265
        %v1300 = vunpack.c.l.b16 %v1266
        %v1301 = vunpack.c.l.b16 %v1267
        %v1302 = vunpack.c.l.b16 %v1268
        %v1303 = vunpack.c.l.b16 %v1269
        %v1304 = vunpack.c.l.b16 %v1270
        %v1305 = vpack.c.b16 %v1290, %v1289
        %v1306 = vpack.c.b16 %v1292, %v1291
        %v1307 = vpack.c.b16 %v1294, %v1293
        %v1308 = vpack.c.b16 %v1296, %v1295
        %v1309 = vpack.c.b16 %v1298, %v1297
        %v1310 = vpack.c.b16 %v1300, %v1299
        %v1311 = vpack.c.b16 %v1302, %v1301
        %v1312 = vpack.c.b16 %v1304, %v1303
        %v1315 = vunpack.c.l.b16 %v1271
        %v1316 = vunpack.c.l.b16 %v1272
        %v1317 = vpack.c.b16 %v1316, %v1315
        %v1319 = vsel %vm572, %v1305, 0
        %v1322 = vsel %vm572, %v1306, 0
        %v1325 = vsel %vm572, %v1307, 0
        %v1328 = vsel %vm572, %v1308, 0
        %v1331 = vsel %vm572, %v1309, 0
        %v1334 = vsel %vm572, %v1310, 0
        %v1337 = vsel %vm572, %v1311, 0
        %v1340 = vsel %vm572, %v1312, 0
        %v1343 = vand.u32 %v1317, %v600
        %1345 = vmatprep.subr.bf16.mxu0 0
        %1346 = vmatpush1.bf16.msra.mxu0 0
        %1347 = vmatprep.subr.bf16.mxu0 0
        %1348 = vmatpush1.bf16.msra.mxu0 0
        %1349 = vmatprep.subr.bf16.mxu0 0
        %1350 = vmatpush1.bf16.msra.mxu0 0
        %1351 = vmatprep.subr.bf16.mxu0 0
        %1352 = vmatpush1.bf16.msra.mxu0 0
        %1353 = vmatprep.subr.bf16.mxu0 0
        %1354 = vmatpush1.bf16.msra.mxu0 0
        %1355 = vmatprep.subr.bf16.mxu0 0
        %1356 = vmatpush1.bf16.msra.mxu0 0
        %1357 = vmatprep.subr.bf16.mxu0 0
        %1358 = vmatpush1.bf16.msra.mxu0 0
        %1359 = vmatprep.subr.bf16.mxu0 0
        %1360 = vmatpush1.bf16.msra.mxu0 %v1343
        %1361 = vmatprep.subr.bf16.mxu0 0
        %1362 = vmatpush2.bf16.msra.mxu0 0
        %1363 = vmatprep.subr.bf16.mxu0 0
        %1364 = vmatpush2.bf16.msra.mxu0 0
        %1365 = vmatprep.subr.bf16.mxu0 0
        %1366 = vmatpush2.bf16.msra.mxu0 0
        %1367 = vmatprep.subr.bf16.mxu0 0
        %1368 = vmatpush2.bf16.msra.mxu0 0
        %1369 = vmatprep.subr.bf16.mxu0 0
        %1370 = vmatpush2.bf16.msra.mxu0 0
        %1371 = vmatprep.subr.bf16.mxu0 0
        %1372 = vmatpush2.bf16.msra.mxu0 0
        %1373 = vmatprep.subr.bf16.mxu0 0
        %1374 = vmatpush2.bf16.msra.mxu0 0
        %1375 = vmatprep.subr.bf16.mxu0 0
        %1376 = vmatpush2.bf16.msra.mxu0 0
        %1377 = vmatprep.mubr.bf16.mxu0 0
        %1378 = vmatmul.mubr.bf16.gmra.mxu0 %v1319
        %v1379 = vpop.f32.mrf.mxu0
        %v1380 = vadd.f32 0.0, %v1379
        %v1381 = vpop.f32.mrf.mxu0
        %v1382 = vpop.f32.mrf.mxu0
        %v1383 = vadd.f32 0.0, %v1382
        %v1384 = vpop.f32.mrf.mxu0
        %1385 = vmatprep.mubr.bf16.mxu0 0
        %1386 = vmatmul.mubr.bf16.gmra.mxu0 %v1322
        %v1387 = vpop.f32.mrf.mxu0
        %v1388 = vadd.f32 0.0, %v1387
        %v1389 = vpop.f32.mrf.mxu0
        %v1390 = vpop.f32.mrf.mxu0
        %v1391 = vadd.f32 0.0, %v1390
        %v1392 = vpop.f32.mrf.mxu0
        %1393 = vmatprep.mubr.bf16.mxu0 0
        %1394 = vmatmul.mubr.bf16.gmra.mxu0 %v1325
        %v1395 = vpop.f32.mrf.mxu0
        %v1396 = vadd.f32 0.0, %v1395
        %v1397 = vpop.f32.mrf.mxu0
        %v1398 = vpop.f32.mrf.mxu0
        %v1399 = vadd.f32 0.0, %v1398
        %v1400 = vpop.f32.mrf.mxu0
        %1401 = vmatprep.mubr.bf16.mxu0 0
        %1402 = vmatmul.mubr.bf16.gmra.mxu0 %v1328
        %v1403 = vpop.f32.mrf.mxu0
        %v1404 = vadd.f32 0.0, %v1403
        %v1405 = vpop.f32.mrf.mxu0
        %v1406 = vpop.f32.mrf.mxu0
        %v1407 = vadd.f32 0.0, %v1406
        %v1408 = vpop.f32.mrf.mxu0
        %1409 = vmatprep.mubr.bf16.mxu0 0
        %1410 = vmatmul.mubr.bf16.gmra.mxu0 %v1331
        %v1411 = vpop.f32.mrf.mxu0
        %v1412 = vadd.f32 0.0, %v1411
        %v1413 = vpop.f32.mrf.mxu0
        %v1414 = vpop.f32.mrf.mxu0
        %v1415 = vadd.f32 0.0, %v1414
        %v1416 = vpop.f32.mrf.mxu0
        %1417 = vmatprep.mubr.bf16.mxu0 0
        %1418 = vmatmul.mubr.bf16.gmra.mxu0 %v1334
        %v1419 = vpop.f32.mrf.mxu0
        %v1420 = vadd.f32 0.0, %v1419
        %v1421 = vpop.f32.mrf.mxu0
        %v1422 = vpop.f32.mrf.mxu0
        %v1423 = vadd.f32 0.0, %v1422
        %v1424 = vpop.f32.mrf.mxu0
        %1425 = vmatprep.mubr.bf16.mxu0 0
        %1426 = vmatmul.mubr.bf16.gmra.mxu0 %v1337
        %v1427 = vpop.f32.mrf.mxu0
        %v1428 = vadd.f32 0.0, %v1427
        %v1429 = vpop.f32.mrf.mxu0
        %v1430 = vpop.f32.mrf.mxu0
        %v1431 = vadd.f32 0.0, %v1430
        %v1432 = vpop.f32.mrf.mxu0
        %1433 = vmatprep.mubr.bf16.mxu0 0
        %1434 = vmatmul.mubr.bf16.gmra.mxu0 %v1340
        %v1435 = vpop.f32.mrf.mxu0
        %v1436 = vadd.f32 0.0, %v1435
        %v1437 = vpop.f32.mrf.mxu0
        %v1438 = vpop.f32.mrf.mxu0
        %v1439 = vadd.f32 0.0, %v1438
        %v1440 = vpop.f32.mrf.mxu0
        %1441 = vdwg.mxu0
        %v1442 = vmax.f32 %v1380, 0.0
        %v1443 = vmax.f32 %v1383, 0.0
        %v1444 = vmax.f32 %v1388, 0.0
        %v1445 = vmax.f32 %v1391, 0.0
        %v1446 = vmax.f32 %v1396, 0.0
        %v1447 = vmax.f32 %v1399, 0.0
        %v1448 = vmax.f32 %v1404, 0.0
        %v1449 = vmax.f32 %v1407, 0.0
        %v1450 = vmax.f32 %v1412, 0.0
        %v1451 = vmax.f32 %v1415, 0.0
        %v1452 = vmax.f32 %v1420, 0.0
        %v1453 = vmax.f32 %v1423, 0.0
        %v1454 = vmax.f32 %v1428, 0.0
        %v1455 = vmax.f32 %v1431, 0.0
        %v1456 = vmax.f32 %v1436, 0.0
        %v1457 = vmax.f32 %v1439, 0.0
        %v1458 = vpack.c.bf16 %v1443, %v1442
        %v1459 = vpack.c.bf16 %v1445, %v1444
        %v1460 = vpack.c.bf16 %v1447, %v1446
        %v1461 = vpack.c.bf16 %v1449, %v1448
        %v1462 = vpack.c.bf16 %v1451, %v1450
        %v1463 = vpack.c.bf16 %v1453, %v1452
        %v1464 = vpack.c.bf16 %v1455, %v1454
        %v1465 = vpack.c.bf16 %v1457, %v1456
        %v1466 = vld [vmem:[%s10] sm:$0xf]
        %v1467 = vld [vmem:[%s10 + $0x4] sm:$0xf]
        %v1468 = vld [vmem:[%s10 + $0x8] sm:$0xf]
        %v1469 = vld [vmem:[%s10 + $0xc] sm:$0xf]
        %v1470 = vld [vmem:[%s10 + $0x10] sm:$0x1]
        %v1476 = vunpack.c.l.b16 %v1466
        %v1477 = vunpack.c.l.b16 %v1467
        %v1478 = vunpack.c.l.b16 %v1468
        %v1479 = vunpack.c.l.b16 %v1469
        %v1480 = vunpack.c.l.b16 %v1470
        %v1481 = vpack.c.b16 %v1477, %v1476
        %v1482 = vpack.c.b16 %v1479, %v1478
        %v1483 = vpack.c.b16 %v1480, %v1480
        %vm1486 = vcmask 269312
        %v1488 = vsel %vm1486, %v1458, 0
        %v1491 = vsel %vm1486, %v1459, 0
        %v1494 = vsel %vm1486, %v1460, 0
        %v1497 = vsel %vm1486, %v1461, 0
        %v1500 = vsel %vm1486, %v1462, 0
        %v1503 = vsel %vm1486, %v1463, 0
        %v1506 = vsel %vm1486, %v1464, 0
        %v1509 = vsel %vm1486, %v1465, 0
        %vm1511 = vcmask 1040384
        %v1512 = vsel 0, 4294967295, 65535
        %v1513 = vsel %vm1511, %v1512, 0
        %v1515 = vand.u32 %v1483, %v1513
        %1517 = vmatprep.subr.bf16.mxu0 0
        %1518 = vmatpush1.bf16.msra.mxu0 0
        %1519 = vmatprep.subr.bf16.mxu0 0
        %1520 = vmatpush1.bf16.msra.mxu0 0
        %1521 = vmatprep.subr.bf16.mxu0 0
        %1522 = vmatpush1.bf16.msra.mxu0 0
        %1523 = vmatprep.subr.bf16.mxu0 0
        %1524 = vmatpush1.bf16.msra.mxu0 0
        %1525 = vmatprep.subr.bf16.mxu0 0
        %1526 = vmatpush1.bf16.msra.mxu0 0
        %1527 = vmatprep.subr.bf16.mxu0 0
        %1528 = vmatpush1.bf16.msra.mxu0 %v1515
        %1529 = vmatprep.subr.bf16.mxu0 0
        %1530 = vmatpush1.bf16.msra.mxu0 %v1482
        %1531 = vmatprep.subr.bf16.mxu0 0
        %1532 = vmatpush1.bf16.msra.mxu0 %v1481
        %1533 = vmatprep.subr.bf16.mxu0 0
        %1534 = vmatpush2.bf16.msra.mxu0 0
        %1535 = vmatprep.subr.bf16.mxu0 0
        %1536 = vmatpush2.bf16.msra.mxu0 0
        %1537 = vmatprep.subr.bf16.mxu0 0
        %1538 = vmatpush2.bf16.msra.mxu0 0
        %1539 = vmatprep.subr.bf16.mxu0 0
        %1540 = vmatpush2.bf16.msra.mxu0 0
        %1541 = vmatprep.subr.bf16.mxu0 0
        %1542 = vmatpush2.bf16.msra.mxu0 0
        %1543 = vmatprep.subr.bf16.mxu0 0
        %1544 = vmatpush2.bf16.msra.mxu0 0
        %1545 = vmatprep.subr.bf16.mxu0 0
        %1546 = vmatpush2.bf16.msra.mxu0 0
        %1547 = vmatprep.subr.bf16.mxu0 0
        %1548 = vmatpush2.bf16.msra.mxu0 0
        %1549 = vmatprep.mubr.bf16.mxu0 0
        %1550 = vmatmul.mubr.bf16.gmra.mxu0 %v1488
        %v1551 = vpop.f32.mrf.mxu0
        %v1552 = vadd.f32 0.0, %v1551
        %v1553 = vpop.f32.mrf.mxu0
        %v1554 = vpop.f32.mrf.mxu0
        %v1555 = vadd.f32 0.0, %v1554
        %v1556 = vpop.f32.mrf.mxu0
        %1557 = vmatprep.mubr.bf16.mxu0 0
        %1558 = vmatmul.mubr.bf16.gmra.mxu0 %v1491
        %v1559 = vpop.f32.mrf.mxu0
        %v1560 = vadd.f32 0.0, %v1559
        %v1561 = vpop.f32.mrf.mxu0
        %v1562 = vpop.f32.mrf.mxu0
        %v1563 = vadd.f32 0.0, %v1562
        %v1564 = vpop.f32.mrf.mxu0
        %1565 = vmatprep.mubr.bf16.mxu0 0
        %1566 = vmatmul.mubr.bf16.gmra.mxu0 %v1494
        %v1567 = vpop.f32.mrf.mxu0
        %v1568 = vadd.f32 0.0, %v1567
        %v1569 = vpop.f32.mrf.mxu0
        %v1570 = vpop.f32.mrf.mxu0
        %v1571 = vadd.f32 0.0, %v1570
        %v1572 = vpop.f32.mrf.mxu0
        %1573 = vmatprep.mubr.bf16.mxu0 0
        %1574 = vmatmul.mubr.bf16.gmra.mxu0 %v1497
        %v1575 = vpop.f32.mrf.mxu0
        %v1576 = vadd.f32 0.0, %v1575
        %v1577 = vpop.f32.mrf.mxu0
        %v1578 = vpop.f32.mrf.mxu0
        %v1579 = vadd.f32 0.0, %v1578
        %v1580 = vpop.f32.mrf.mxu0
        %1581 = vmatprep.mubr.bf16.mxu0 0
        %1582 = vmatmul.mubr.bf16.gmra.mxu0 %v1500
        %v1583 = vpop.f32.mrf.mxu0
        %v1584 = vadd.f32 0.0, %v1583
        %v1585 = vpop.f32.mrf.mxu0
        %v1586 = vpop.f32.mrf.mxu0
        %v1587 = vadd.f32 0.0, %v1586
        %v1588 = vpop.f32.mrf.mxu0
        %1589 = vmatprep.mubr.bf16.mxu0 0
        %1590 = vmatmul.mubr.bf16.gmra.mxu0 %v1503
        %v1591 = vpop.f32.mrf.mxu0
        %v1592 = vadd.f32 0.0, %v1591
        %v1593 = vpop.f32.mrf.mxu0
        %v1594 = vpop.f32.mrf.mxu0
        %v1595 = vadd.f32 0.0, %v1594
        %v1596 = vpop.f32.mrf.mxu0
        %1597 = vmatprep.mubr.bf16.mxu0 0
        %1598 = vmatmul.mubr.bf16.gmra.mxu0 %v1506
        %v1599 = vpop.f32.mrf.mxu0
        %v1600 = vadd.f32 0.0, %v1599
        %v1601 = vpop.f32.mrf.mxu0
        %v1602 = vpop.f32.mrf.mxu0
        %v1603 = vadd.f32 0.0, %v1602
        %v1604 = vpop.f32.mrf.mxu0
        %1605 = vmatprep.mubr.bf16.mxu0 0
        %1606 = vmatmul.mubr.bf16.gmra.mxu0 %v1509
        %v1607 = vpop.f32.mrf.mxu0
        %v1608 = vadd.f32 0.0, %v1607
        %v1609 = vpop.f32.mrf.mxu0
        %v1610 = vpop.f32.mrf.mxu0
        %v1611 = vadd.f32 0.0, %v1610
        %v1612 = vpop.f32.mrf.mxu0
        %1613 = vdwg.mxu0
        %v1614 = vmax.f32 %v1552, 0.0
        %v1615 = vmax.f32 %v1555, 0.0
        %v1616 = vmax.f32 %v1560, 0.0
        %v1617 = vmax.f32 %v1563, 0.0
        %v1618 = vmax.f32 %v1568, 0.0
        %v1619 = vmax.f32 %v1571, 0.0
        %v1620 = vmax.f32 %v1576, 0.0
        %v1621 = vmax.f32 %v1579, 0.0
        %v1622 = vmax.f32 %v1584, 0.0
        %v1623 = vmax.f32 %v1587, 0.0
        %v1624 = vmax.f32 %v1592, 0.0
        %v1625 = vmax.f32 %v1595, 0.0
        %v1626 = vmax.f32 %v1600, 0.0
        %v1627 = vmax.f32 %v1603, 0.0
        %v1628 = vmax.f32 %v1608, 0.0
        %v1629 = vmax.f32 %v1611, 0.0
        %v1630 = vpack.c.bf16 %v1615, %v1614
        %v1631 = vpack.c.bf16 %v1617, %v1616
        %v1632 = vpack.c.bf16 %v1619, %v1618
        %v1633 = vpack.c.bf16 %v1621, %v1620
        %v1634 = vpack.c.bf16 %v1623, %v1622
        %v1635 = vpack.c.bf16 %v1625, %v1624
        %v1636 = vpack.c.bf16 %v1627, %v1626
        %v1637 = vpack.c.bf16 %v1629, %v1628
        %v1638 = vld [vmem:[%s11] sm:$0xf]
        %v1639 = vld [vmem:[%s11 + $0x4] sm:$0xf]
        %v1640 = vld [vmem:[%s11 + $0x8] sm:$0xf]
        %v1641 = vld [vmem:[%s11 + $0xc] sm:$0xf]
        %v1642 = vld [vmem:[%s11 + $0x10] sm:$0x1]
        %v1648 = vunpack.c.l.b16 %v1638
        %v1649 = vunpack.c.l.b16 %v1639
        %v1650 = vunpack.c.l.b16 %v1640
        %v1651 = vunpack.c.l.b16 %v1641
        %v1652 = vunpack.c.l.b16 %v1642
        %v1653 = vpack.c.b16 %v1649, %v1648
        %v1654 = vpack.c.b16 %v1651, %v1650
        %v1655 = vpack.c.b16 %v1652, %v1652
        %v1659 = vsel %vm1486, %v1630, 0
        %v1662 = vsel %vm1486, %v1631, 0
        %v1665 = vsel %vm1486, %v1632, 0
        %v1668 = vsel %vm1486, %v1633, 0
        %v1671 = vsel %vm1486, %v1634, 0
        %v1674 = vsel %vm1486, %v1635, 0
        %v1677 = vsel %vm1486, %v1636, 0
        %v1680 = vsel %vm1486, %v1637, 0
        %v1683 = vand.u32 %v1655, %v1513
        %1685 = vmatprep.subr.bf16.mxu0 0
        %1686 = vmatpush1.bf16.msra.mxu0 0
        %1687 = vmatprep.subr.bf16.mxu0 0
        %1688 = vmatpush1.bf16.msra.mxu0 0
        %1689 = vmatprep.subr.bf16.mxu0 0
        %1690 = vmatpush1.bf16.msra.mxu0 0
        %1691 = vmatprep.subr.bf16.mxu0 0
        %1692 = vmatpush1.bf16.msra.mxu0 0
        %1693 = vmatprep.subr.bf16.mxu0 0
        %1694 = vmatpush1.bf16.msra.mxu0 0
        %1695 = vmatprep.subr.bf16.mxu0 0
        %1696 = vmatpush1.bf16.msra.mxu0 %v1683
        %1697 = vmatprep.subr.bf16.mxu0 0
        %1698 = vmatpush1.bf16.msra.mxu0 %v1654
        %1699 = vmatprep.subr.bf16.mxu0 0
        %1700 = vmatpush1.bf16.msra.mxu0 %v1653
        %1701 = vmatprep.subr.bf16.mxu0 0
        %1702 = vmatpush2.bf16.msra.mxu0 0
        %1703 = vmatprep.subr.bf16.mxu0 0
        %1704 = vmatpush2.bf16.msra.mxu0 0
        %1705 = vmatprep.subr.bf16.mxu0 0
        %1706 = vmatpush2.bf16.msra.mxu0 0
        %1707 = vmatprep.subr.bf16.mxu0 0
        %1708 = vmatpush2.bf16.msra.mxu0 0
        %1709 = vmatprep.subr.bf16.mxu0 0
        %1710 = vmatpush2.bf16.msra.mxu0 0
        %1711 = vmatprep.subr.bf16.mxu0 0
        %1712 = vmatpush2.bf16.msra.mxu0 0
        %1713 = vmatprep.subr.bf16.mxu0 0
        %1714 = vmatpush2.bf16.msra.mxu0 0
        %1715 = vmatprep.subr.bf16.mxu0 0
        %1716 = vmatpush2.bf16.msra.mxu0 0
        %1717 = vmatprep.mubr.bf16.mxu0 0
        %1718 = vmatmul.mubr.bf16.gmra.mxu0 %v1659
        %v1719 = vpop.f32.mrf.mxu0
        %v1720 = vadd.f32 0.0, %v1719
        %v1721 = vpop.f32.mrf.mxu0
        %v1722 = vpop.f32.mrf.mxu0
        %v1723 = vadd.f32 0.0, %v1722
        %v1724 = vpop.f32.mrf.mxu0
        %1725 = vmatprep.mubr.bf16.mxu0 0
        %1726 = vmatmul.mubr.bf16.gmra.mxu0 %v1662
        %v1727 = vpop.f32.mrf.mxu0
        %v1728 = vadd.f32 0.0, %v1727
        %v1729 = vpop.f32.mrf.mxu0
        %v1730 = vpop.f32.mrf.mxu0
        %v1731 = vadd.f32 0.0, %v1730
        %v1732 = vpop.f32.mrf.mxu0
        %1733 = vmatprep.mubr.bf16.mxu0 0
        %1734 = vmatmul.mubr.bf16.gmra.mxu0 %v1665
        %v1735 = vpop.f32.mrf.mxu0
        %v1736 = vadd.f32 0.0, %v1735
        %v1737 = vpop.f32.mrf.mxu0
        %v1738 = vpop.f32.mrf.mxu0
        %v1739 = vadd.f32 0.0, %v1738
        %v1740 = vpop.f32.mrf.mxu0
        %1741 = vmatprep.mubr.bf16.mxu0 0
        %1742 = vmatmul.mubr.bf16.gmra.mxu0 %v1668
        %v1743 = vpop.f32.mrf.mxu0
        %v1744 = vadd.f32 0.0, %v1743
        %v1745 = vpop.f32.mrf.mxu0
        %v1746 = vpop.f32.mrf.mxu0
        %v1747 = vadd.f32 0.0, %v1746
        %v1748 = vpop.f32.mrf.mxu0
        %1749 = vmatprep.mubr.bf16.mxu0 0
        %1750 = vmatmul.mubr.bf16.gmra.mxu0 %v1671
        %v1751 = vpop.f32.mrf.mxu0
        %v1752 = vadd.f32 0.0, %v1751
        %v1753 = vpop.f32.mrf.mxu0
        %v1754 = vpop.f32.mrf.mxu0
        %v1755 = vadd.f32 0.0, %v1754
        %v1756 = vpop.f32.mrf.mxu0
        %1757 = vmatprep.mubr.bf16.mxu0 0
        %1758 = vmatmul.mubr.bf16.gmra.mxu0 %v1674
        %v1759 = vpop.f32.mrf.mxu0
        %v1760 = vadd.f32 0.0, %v1759
        %v1761 = vpop.f32.mrf.mxu0
        %v1762 = vpop.f32.mrf.mxu0
        %v1763 = vadd.f32 0.0, %v1762
        %v1764 = vpop.f32.mrf.mxu0
        %1765 = vmatprep.mubr.bf16.mxu0 0
        %1766 = vmatmul.mubr.bf16.gmra.mxu0 %v1677
        %v1767 = vpop.f32.mrf.mxu0
        %v1768 = vadd.f32 0.0, %v1767
        %v1769 = vpop.f32.mrf.mxu0
        %v1770 = vpop.f32.mrf.mxu0
        %v1771 = vadd.f32 0.0, %v1770
        %v1772 = vpop.f32.mrf.mxu0
        %1773 = vmatprep.mubr.bf16.mxu0 0
        %1774 = vmatmul.mubr.bf16.gmra.mxu0 %v1680
        %v1775 = vpop.f32.mrf.mxu0
        %v1776 = vadd.f32 0.0, %v1775
        %v1777 = vpop.f32.mrf.mxu0
        %v1778 = vpop.f32.mrf.mxu0
        %v1779 = vadd.f32 0.0, %v1778
        %v1780 = vpop.f32.mrf.mxu0
        %1781 = vdwg.mxu0
        %v1782 = vmax.f32 %v1720, 0.0
        %v1783 = vmax.f32 %v1723, 0.0
        %v1784 = vmax.f32 %v1728, 0.0
        %v1785 = vmax.f32 %v1731, 0.0
        %v1786 = vmax.f32 %v1736, 0.0
        %v1787 = vmax.f32 %v1739, 0.0
        %v1788 = vmax.f32 %v1744, 0.0
        %v1789 = vmax.f32 %v1747, 0.0
        %v1790 = vmax.f32 %v1752, 0.0
        %v1791 = vmax.f32 %v1755, 0.0
        %v1792 = vmax.f32 %v1760, 0.0
        %v1793 = vmax.f32 %v1763, 0.0
        %v1794 = vmax.f32 %v1768, 0.0
        %v1795 = vmax.f32 %v1771, 0.0
        %v1796 = vmax.f32 %v1776, 0.0
        %v1797 = vmax.f32 %v1779, 0.0
        %v1798 = vpack.c.bf16 %v1783, %v1782
        %v1799 = vpack.c.bf16 %v1785, %v1784
        %v1800 = vpack.c.bf16 %v1787, %v1786
        %v1801 = vpack.c.bf16 %v1789, %v1788
        %v1802 = vpack.c.bf16 %v1791, %v1790
        %v1803 = vpack.c.bf16 %v1793, %v1792
        %v1804 = vpack.c.bf16 %v1795, %v1794
        %v1805 = vpack.c.bf16 %v1797, %v1796
        %v1806 = vld [vmem:[%s12] sm:$0xf]
        %v1807 = vld [vmem:[%s12 + $0x4] sm:$0xf]
        %v1808 = vld [vmem:[%s12 + $0x8] sm:$0xf]
        %v1809 = vld [vmem:[%s12 + $0xc] sm:$0xf]
        %v1810 = vld [vmem:[%s12 + $0x10] sm:$0x1]
        %v1816 = vunpack.c.l.b16 %v1806
        %v1817 = vunpack.c.l.b16 %v1807
        %v1818 = vunpack.c.l.b16 %v1808
        %v1819 = vunpack.c.l.b16 %v1809
        %v1820 = vunpack.c.l.b16 %v1810
        %v1821 = vpack.c.b16 %v1817, %v1816
        %v1822 = vpack.c.b16 %v1819, %v1818
        %v1823 = vpack.c.b16 %v1820, %v1820
        %v1827 = vsel %vm1486, %v1798, 0
        %v1830 = vsel %vm1486, %v1799, 0
        %v1833 = vsel %vm1486, %v1800, 0
        %v1836 = vsel %vm1486, %v1801, 0
        %v1839 = vsel %vm1486, %v1802, 0
        %v1842 = vsel %vm1486, %v1803, 0
        %v1845 = vsel %vm1486, %v1804, 0
        %v1848 = vsel %vm1486, %v1805, 0
        %v1851 = vand.u32 %v1823, %v1513
        %1853 = vmatprep.subr.bf16.mxu0 0
        %1854 = vmatpush1.bf16.msra.mxu0 0
        %1855 = vmatprep.subr.bf16.mxu0 0
        %1856 = vmatpush1.bf16.msra.mxu0 0
        %1857 = vmatprep.subr.bf16.mxu0 0
        %1858 = vmatpush1.bf16.msra.mxu0 0
        %1859 = vmatprep.subr.bf16.mxu0 0
        %1860 = vmatpush1.bf16.msra.mxu0 0
        %1861 = vmatprep.subr.bf16.mxu0 0
        %1862 = vmatpush1.bf16.msra.mxu0 0
        %1863 = vmatprep.subr.bf16.mxu0 0
        %1864 = vmatpush1.bf16.msra.mxu0 %v1851
        %1865 = vmatprep.subr.bf16.mxu0 0
        %1866 = vmatpush1.bf16.msra.mxu0 %v1822
        %1867 = vmatprep.subr.bf16.mxu0 0
        %1868 = vmatpush1.bf16.msra.mxu0 %v1821
        %1869 = vmatprep.subr.bf16.mxu0 0
        %1870 = vmatpush2.bf16.msra.mxu0 0
        %1871 = vmatprep.subr.bf16.mxu0 0
        %1872 = vmatpush2.bf16.msra.mxu0 0
        %1873 = vmatprep.subr.bf16.mxu0 0
        %1874 = vmatpush2.bf16.msra.mxu0 0
        %1875 = vmatprep.subr.bf16.mxu0 0
        %1876 = vmatpush2.bf16.msra.mxu0 0
        %1877 = vmatprep.subr.bf16.mxu0 0
        %1878 = vmatpush2.bf16.msra.mxu0 0
        %1879 = vmatprep.subr.bf16.mxu0 0
        %1880 = vmatpush2.bf16.msra.mxu0 0
        %1881 = vmatprep.subr.bf16.mxu0 0
        %1882 = vmatpush2.bf16.msra.mxu0 0
        %1883 = vmatprep.subr.bf16.mxu0 0
        %1884 = vmatpush2.bf16.msra.mxu0 0
        %1885 = vmatprep.mubr.bf16.mxu0 0
        %1886 = vmatmul.mubr.bf16.gmra.mxu0 %v1827
        %v1887 = vpop.f32.mrf.mxu0
        %v1888 = vadd.f32 0.0, %v1887
        %v1889 = vpop.f32.mrf.mxu0
        %v1890 = vpop.f32.mrf.mxu0
        %v1891 = vadd.f32 0.0, %v1890
        %v1892 = vpop.f32.mrf.mxu0
        %1893 = vmatprep.mubr.bf16.mxu0 0
        %1894 = vmatmul.mubr.bf16.gmra.mxu0 %v1830
        %v1895 = vpop.f32.mrf.mxu0
        %v1896 = vadd.f32 0.0, %v1895
        %v1897 = vpop.f32.mrf.mxu0
        %v1898 = vpop.f32.mrf.mxu0
        %v1899 = vadd.f32 0.0, %v1898
        %v1900 = vpop.f32.mrf.mxu0
        %1901 = vmatprep.mubr.bf16.mxu0 0
        %1902 = vmatmul.mubr.bf16.gmra.mxu0 %v1833
        %v1903 = vpop.f32.mrf.mxu0
        %v1904 = vadd.f32 0.0, %v1903
        %v1905 = vpop.f32.mrf.mxu0
        %v1906 = vpop.f32.mrf.mxu0
        %v1907 = vadd.f32 0.0, %v1906
        %v1908 = vpop.f32.mrf.mxu0
        %1909 = vmatprep.mubr.bf16.mxu0 0
        %1910 = vmatmul.mubr.bf16.gmra.mxu0 %v1836
        %v1911 = vpop.f32.mrf.mxu0
        %v1912 = vadd.f32 0.0, %v1911
        %v1913 = vpop.f32.mrf.mxu0
        %v1914 = vpop.f32.mrf.mxu0
        %v1915 = vadd.f32 0.0, %v1914
        %v1916 = vpop.f32.mrf.mxu0
        %1917 = vmatprep.mubr.bf16.mxu0 0
        %1918 = vmatmul.mubr.bf16.gmra.mxu0 %v1839
        %v1919 = vpop.f32.mrf.mxu0
        %v1920 = vadd.f32 0.0, %v1919
        %v1921 = vpop.f32.mrf.mxu0
        %v1922 = vpop.f32.mrf.mxu0
        %v1923 = vadd.f32 0.0, %v1922
        %v1924 = vpop.f32.mrf.mxu0
        %1925 = vmatprep.mubr.bf16.mxu0 0
        %1926 = vmatmul.mubr.bf16.gmra.mxu0 %v1842
        %v1927 = vpop.f32.mrf.mxu0
        %v1928 = vadd.f32 0.0, %v1927
        %v1929 = vpop.f32.mrf.mxu0
        %v1930 = vpop.f32.mrf.mxu0
        %v1931 = vadd.f32 0.0, %v1930
        %v1932 = vpop.f32.mrf.mxu0
        %1933 = vmatprep.mubr.bf16.mxu0 0
        %1934 = vmatmul.mubr.bf16.gmra.mxu0 %v1845
        %v1935 = vpop.f32.mrf.mxu0
        %v1936 = vadd.f32 0.0, %v1935
        %v1937 = vpop.f32.mrf.mxu0
        %v1938 = vpop.f32.mrf.mxu0
        %v1939 = vadd.f32 0.0, %v1938
        %v1940 = vpop.f32.mrf.mxu0
        %1941 = vmatprep.mubr.bf16.mxu0 0
        %1942 = vmatmul.mubr.bf16.gmra.mxu0 %v1848
        %v1943 = vpop.f32.mrf.mxu0
        %v1944 = vadd.f32 0.0, %v1943
        %v1945 = vpop.f32.mrf.mxu0
        %v1946 = vpop.f32.mrf.mxu0
        %v1947 = vadd.f32 0.0, %v1946
        %v1948 = vpop.f32.mrf.mxu0
        %1949 = vdwg.mxu0
        %vm1950 = vcmask 39936
        %v1952 = vsel %vm1950, %v717, 0
        %v1955 = vsel %vm1950, %v718, 0
        %v1958 = vsel %vm1950, %v719, 0
        %v1961 = vsel %vm1950, %v720, 0
        %v1964 = vsel %vm1950, %v721, 0
        %v1967 = vsel %vm1950, %v722, 0
        %v1970 = vsel %vm1950, %v723, 0
        %v1973 = vsel %vm1950, %v724, 0
        %vm1975 = vcmask 1041408
        %vm1976 = vcmask 1042432
        %v1977 = vsel %vm1975, 4294967295, 65535
        %v1978 = vsel %vm1976, %v1977, 0
        %v1980 = vand.u32 %v725, %v1978
        %1982 = vmatprep.subr.bf16.mxu0 0
        %1983 = vmatpush1.bf16.msra.mxu0 0
        %1984 = vmatprep.subr.bf16.mxu0 0
        %1985 = vmatpush1.bf16.msra.mxu0 0
        %1986 = vmatprep.subr.bf16.mxu0 0
        %1987 = vmatpush1.bf16.msra.mxu0 0
        %1988 = vmatprep.subr.bf16.mxu0 0
        %1989 = vmatpush1.bf16.msra.mxu0 0
        %1990 = vmatprep.subr.bf16.mxu0 0
        %1991 = vmatpush1.bf16.msra.mxu0 0
        %1992 = vmatprep.subr.bf16.mxu0 0
        %1993 = vmatpush1.bf16.msra.mxu0 0
        %1994 = vmatprep.subr.bf16.mxu0 0
        %1995 = vmatpush1.bf16.msra.mxu0 0
        %1996 = vmatprep.subr.bf16.mxu0 0
        %1997 = vmatpush1.bf16.msra.mxu0 %v1980
        %1998 = vmatprep.subr.bf16.mxu0 0
        %1999 = vmatpush2.bf16.msra.mxu0 0
        %2000 = vmatprep.subr.bf16.mxu0 0
        %2001 = vmatpush2.bf16.msra.mxu0 0
        %2002 = vmatprep.subr.bf16.mxu0 0
        %2003 = vmatpush2.bf16.msra.mxu0 0
        %2004 = vmatprep.subr.bf16.mxu0 0
        %2005 = vmatpush2.bf16.msra.mxu0 0
        %2006 = vmatprep.subr.bf16.mxu0 0
        %2007 = vmatpush2.bf16.msra.mxu0 0
        %2008 = vmatprep.subr.bf16.mxu0 0
        %2009 = vmatpush2.bf16.msra.mxu0 0
        %2010 = vmatprep.subr.bf16.mxu0 0
        %2011 = vmatpush2.bf16.msra.mxu0 0
        %2012 = vmatprep.subr.bf16.mxu0 0
        %2013 = vmatpush2.bf16.msra.mxu0 0
        %2014 = vmatprep.mubr.bf16.mxu0 0
        %2015 = vmatmul.mubr.bf16.gmra.mxu0 %v1952
        %v2016 = vpop.f32.mrf.mxu0
        %v2017 = vadd.f32 %v1006, %v2016
        %v2018 = vpop.f32.mrf.mxu0
        %v2019 = vpop.f32.mrf.mxu0
        %v2020 = vadd.f32 %v1009, %v2019
        %v2021 = vpop.f32.mrf.mxu0
        %2022 = vmatprep.mubr.bf16.mxu0 0
        %2023 = vmatmul.mubr.bf16.gmra.mxu0 %v1955
        %v2024 = vpop.f32.mrf.mxu0
        %v2025 = vadd.f32 %v1014, %v2024
        %v2026 = vpop.f32.mrf.mxu0
        %v2027 = vpop.f32.mrf.mxu0
        %v2028 = vadd.f32 %v1017, %v2027
        %v2029 = vpop.f32.mrf.mxu0
        %2030 = vmatprep.mubr.bf16.mxu0 0
        %2031 = vmatmul.mubr.bf16.gmra.mxu0 %v1958
        %v2032 = vpop.f32.mrf.mxu0
        %v2033 = vadd.f32 %v1022, %v2032
        %v2034 = vpop.f32.mrf.mxu0
        %v2035 = vpop.f32.mrf.mxu0
        %v2036 = vadd.f32 %v1025, %v2035
        %v2037 = vpop.f32.mrf.mxu0
        %2038 = vmatprep.mubr.bf16.mxu0 0
        %2039 = vmatmul.mubr.bf16.gmra.mxu0 %v1961
        %v2040 = vpop.f32.mrf.mxu0
        %v2041 = vadd.f32 %v1030, %v2040
        %v2042 = vpop.f32.mrf.mxu0
        %v2043 = vpop.f32.mrf.mxu0
        %v2044 = vadd.f32 %v1033, %v2043
        %v2045 = vpop.f32.mrf.mxu0
        %2046 = vmatprep.mubr.bf16.mxu0 0
        %2047 = vmatmul.mubr.bf16.gmra.mxu0 %v1964
        %v2048 = vpop.f32.mrf.mxu0
        %v2049 = vadd.f32 %v1038, %v2048
        %v2050 = vpop.f32.mrf.mxu0
        %v2051 = vpop.f32.mrf.mxu0
        %v2052 = vadd.f32 %v1041, %v2051
        %v2053 = vpop.f32.mrf.mxu0
        %2054 = vmatprep.mubr.bf16.mxu0 0
        %2055 = vmatmul.mubr.bf16.gmra.mxu0 %v1967
        %v2056 = vpop.f32.mrf.mxu0
        %v2057 = vadd.f32 %v1046, %v2056
        %v2058 = vpop.f32.mrf.mxu0
        %v2059 = vpop.f32.mrf.mxu0
        %v2060 = vadd.f32 %v1049, %v2059
        %v2061 = vpop.f32.mrf.mxu0
        %2062 = vmatprep.mubr.bf16.mxu0 0
        %2063 = vmatmul.mubr.bf16.gmra.mxu0 %v1970
        %v2064 = vpop.f32.mrf.mxu0
        %v2065 = vadd.f32 %v1054, %v2064
        %v2066 = vpop.f32.mrf.mxu0
        %v2067 = vpop.f32.mrf.mxu0
        %v2068 = vadd.f32 %v1057, %v2067
        %v2069 = vpop.f32.mrf.mxu0
        %2070 = vmatprep.mubr.bf16.mxu0 0
        %2071 = vmatmul.mubr.bf16.gmra.mxu0 %v1973
        %v2072 = vpop.f32.mrf.mxu0
        %v2073 = vadd.f32 %v1062, %v2072
        %v2074 = vpop.f32.mrf.mxu0
        %v2075 = vpop.f32.mrf.mxu0
        %v2076 = vadd.f32 %v1065, %v2075
        %v2077 = vpop.f32.mrf.mxu0
        %2078 = vdwg.mxu0
        %v2079 = vadd.f32 %v2017, %v1193
        %v2080 = vadd.f32 %v2020, %v1196
        %v2081 = vadd.f32 %v2025, %v1201
        %v2082 = vadd.f32 %v2028, %v1204
        %v2083 = vadd.f32 %v2033, %v1209
        %v2084 = vadd.f32 %v2036, %v1212
        %v2085 = vadd.f32 %v2041, %v1217
        %v2086 = vadd.f32 %v2044, %v1220
        %v2087 = vadd.f32 %v2049, %v1225
        %v2088 = vadd.f32 %v2052, %v1228
        %v2089 = vadd.f32 %v2057, %v1233
        %v2090 = vadd.f32 %v2060, %v1236
        %v2091 = vadd.f32 %v2065, %v1241
        %v2092 = vadd.f32 %v2068, %v1244
        %v2093 = vadd.f32 %v2073, %v1249
        %v2094 = vadd.f32 %v2076, %v1252
        %v2095 = vadd.f32 %v2079, %v1888
        %v2096 = vadd.f32 %v2080, %v1891
        %v2097 = vadd.f32 %v2081, %v1896
        %v2098 = vadd.f32 %v2082, %v1899
        %v2099 = vadd.f32 %v2083, %v1904
        %v2100 = vadd.f32 %v2084, %v1907
        %v2101 = vadd.f32 %v2085, %v1912
        %v2102 = vadd.f32 %v2086, %v1915
        %v2103 = vadd.f32 %v2087, %v1920
        %v2104 = vadd.f32 %v2088, %v1923
        %v2105 = vadd.f32 %v2089, %v1928
        %v2106 = vadd.f32 %v2090, %v1931
        %v2107 = vadd.f32 %v2091, %v1936
        %v2108 = vadd.f32 %v2092, %v1939
        %v2109 = vadd.f32 %v2093, %v1944
        %v2110 = vadd.f32 %v2094, %v1947
        %2111 = vst [vmem:[%s482] sm:$0xff] %v2095
        %2112 = vst [vmem:[%s482 + $0x8] sm:$0xff] %v2096
        %2113 = vst [vmem:[%s482 + $0x10] sm:$0xff] %v2097
        %2114 = vst [vmem:[%s482 + $0x18] sm:$0xff] %v2098
        %2115 = vst [vmem:[%s482 + $0x20] sm:$0xff] %v2099
        %2116 = vst [vmem:[%s482 + $0x28] sm:$0xff] %v2100
        %2117 = vst [vmem:[%s482 + $0x30] sm:$0xff] %v2101
        %2118 = vst [vmem:[%s482 + $0x38] sm:$0xff] %v2102
        %2119 = vst [vmem:[%s482 + $0x40] sm:$0xff] %v2103
        %2120 = vst [vmem:[%s482 + $0x48] sm:$0xff] %v2104
        %2121 = vst [vmem:[%s482 + $0x50] sm:$0xff] %v2105
        %2122 = vst [vmem:[%s482 + $0x58] sm:$0xff] %v2106
        %2123 = vst [vmem:[%s482 + $0x60] sm:$0xff] %v2107
        %2124 = vst [vmem:[%s482 + $0x68] sm:$0xff] %v2108
        %2125 = vst [vmem:[%s482 + $0x70] sm:$0xff] %v2109
        %2126 = vst [vmem:[%s482 + $0x78] sm:$0xff] %v2110
        %s2127 = sand.u32 %s328, 1
        %s2128 = scalar_lea.sflag [#allocation3], %s2127
        %s2129 = sand.u32 %s328, 1
        %s2130 = smul.addr %s2129, 128
        %s2131 = scalar_lea.vmem [#allocation2], %s2130
        // Predicated region
        $region73: #{tpu_custom_call.1} parent=71 // pred_check
          %p2132 = pneg %p338
        $region74: #{tpu_custom_call.1} parent=71 // pred_check_branch
          %2134 = sbr.rel (%p2132) target = $region76
        $region75: #{tpu_custom_call.1} parent=71 // pred_region
          %s2135 = smul.u32 16, %s27
          %s2137 = ssub.s32 2048, 2048
          %2138 = vsyncadd %s2128, %s2137
          %s2139 = smul.addr %s2135, 128
          %s2140 = scalar_lea.hbm %s13, %s2139
          %s2141 = sshll.u32 %s2131, 4
          %s2142 = int_to_ptr.vmem [resolvable:$true] %s2141
          %2147 = dma.vmem_to_hbm [thread:$0]  %s2142, 2048, %s2140, %s2128, 128, 128, 8
        $region76: #{tpu_custom_call.1} parent=71 // pred_fallthru
          _
      $region72: #{tpu_custom_call.1} parent=5 // pred_fallthru
        _
      %p2148 = scmp.le.s32.totalorder 2, %s22
      // Predicated region
      $region77: #{tpu_custom_call.1} parent=5 // pred_check
        %p2149 = pneg %p2148
      $region78: #{tpu_custom_call.1} parent=5 // pred_check_branch
        %2151 = sbr.rel (%p2149) target = $region80
      $region79: #{tpu_custom_call.1} parent=5 // pred_region
        %s2152 = ssub.s32 %s22, 2
        // Predicated region
        $region81: #{tpu_custom_call.1} parent=79 // pred_check
          %p2153 = pneg %p344
        $region82: #{tpu_custom_call.1} parent=79 // pred_check_branch
          %2155 = sbr.rel (%p2153) target = $region84
        $region83: #{tpu_custom_call.1} parent=79 // pred_region
          %s2156 = sand.u32 %s329, 1
          %s2157 = scalar_lea.sflag [#allocation3], %s2156
          %s2158 = sand.u32 %s329, 1
          %s2159 = smul.addr %s2158, 128
          %s2160 = scalar_lea.vmem [#allocation2], %s2159
          %2161 = dma.done %s2157, 2048
        $region84: #{tpu_custom_call.1} parent=79 // pred_fallthru
          _
      $region80: #{tpu_custom_call.1} parent=5 // pred_fallthru
        _
    $region6: #{tpu_custom_call.1} parent=1 // loop_footer
      %s26 = sadd.s32 1, %s22
    $region7: #{tpu_custom_call.1} parent=1 // loop_footer_branch
      %21 = sbr.rel target = $region3
    $region8: #{tpu_custom_call.1} parent=1 // loop_exit
      _
    %2162 = vsyncpa [#allocation3], 1
    %s2163 = scalar_lea.sflag [#allocation3], 1
    %2164 = vsyncpa %s2163, 1

</llo_original>
